<compile_context>
chip_gen: v7x
topology: tpu7x:2x2x1
jax: 0.10.0
libtpu: 0.0.40
codegen_flags: <defaults>
</compile_context>

<pallas_src>
import jax
import jax.numpy as jnp
from jax.experimental import pallas as pl
from jax.experimental.pallas import tpu as pltpu


# ----------------------------- Pallas kernels -----------------------------

def conv_in_lrelu_kernel(w_ref, b_ref, g_ref, beta_ref, cols_ref, o_ref):
    # One sample: fused Conv(im2col GEMM, bf16 MXU) + bias + InstanceNorm
    # + LeakyReLU(0.01). Lane axis carries the spatial extent.
    acc = jnp.dot(w_ref[...], cols_ref[...],
                  preferred_element_type=jnp.float32)           # (Cout, S) f32
    acc = acc + b_ref[...]                                      # bias (Cout,1)
    mean = jnp.mean(acc, axis=-1, keepdims=True)
    var = jnp.mean((acc - mean) ** 2, axis=-1, keepdims=True)   # biased, as PyTorch
    y = (acc - mean) * jax.lax.rsqrt(var + 1e-5) * g_ref[...] + beta_ref[...]
    o_ref[...] = jnp.where(y >= 0.0, y, 0.01 * y)


def att_gate_kernel(w_ref, b_ref, x_ref, o_ref):
    # downout + sigmoid(conv1x1(downout)) in one pass.
    x = x_ref[...]                                              # (C, S) f32
    logits = jnp.dot(w_ref[...], x.astype(jnp.bfloat16),
                     preferred_element_type=jnp.float32) + b_ref[...]
    logits = jnp.clip(logits, -30.0, 30.0)                      # avoid exp overflow
    gate = pl.reciprocal(1.0 + jnp.exp(-logits), approx=True)   # EUP: exp + vrcp
    o_ref[...] = x + gate


def convt_kernel(w_ref, b_ref, x_ref, o_ref):
    # ConvTranspose2d(k=2, s=2) for one sample as a single lane-dense GEMM:
    # output row = (di*2+dj)*Cout + co; pixel shuffle is deferred (absorbed by
    # the next conv's gather).
    o_ref[...] = (jnp.dot(w_ref[...], x_ref[...].astype(jnp.bfloat16),
                          preferred_element_type=jnp.float32) + b_ref[...])


def up_block_head_kernel(wu_ref, ws_ref, b_ref, g_ref, beta_ref,
                         hw_ref, hb_ref, cu_ref, cs_ref, o_ref, h_ref):
    # Upsample conv block with the concat eliminated:
    #   conv3x3(cat(up, skip)) == cols_up @ W_up^T + cols_skip @ W_skip^T
    # both accumulating into the same f32 accumulator, then bias + IN + LReLU,
    # then the deep-supervision 1x1 head fused in the epilogue.
    acc = jnp.dot(wu_ref[...], cu_ref[...], preferred_element_type=jnp.float32)
    acc = acc + jnp.dot(ws_ref[...], cs_ref[...], preferred_element_type=jnp.float32)
    acc = acc + b_ref[...]
    mean = jnp.mean(acc, axis=-1, keepdims=True)
    var = jnp.mean((acc - mean) ** 2, axis=-1, keepdims=True)
    y = (acc - mean) * jax.lax.rsqrt(var + 1e-5) * g_ref[...] + beta_ref[...]
    y = jnp.where(y >= 0.0, y, 0.01 * y)
    o_ref[...] = y
    # super_head(upout): 1x1 conv on the block already resident in VMEM.
    h_ref[...] = (jnp.dot(hw_ref[...], y.astype(jnp.bfloat16),
                          preferred_element_type=jnp.float32) + hb_ref[...])


# --------------------------- pallas_call wrappers --------------------------

def _cparams(block_bytes, grid_rank=1):
    # Explicit VMEM budget: double-buffered blocks + headroom, capped below
    # v7x's 64 MiB physical VMEM (v5e/v6e have 128 MiB, so this is safe there).
    need = 2 * int(block_bytes) + (4 << 20)
    return pltpu.CompilerParams(
        dimension_semantics=("parallel",) * grid_rank,   # batch splits across TCs (v7x)
        vmem_limit_bytes=int(min(max(need, 8 << 20), 48 << 20)),
    )


def _col(v, rows):
    return v.reshape(rows, 1).astype(jnp.float32)


def conv_in_lrelu(cols, w, b, g, beta):
    """Fused Conv(im2col) + bias + InstanceNorm + LeakyReLU.
    cols: (N, K, S) bf16; w: (Cout, K) bf16; b,g,beta: (Cout,) f32 -> (N, Cout, S) f32."""
    N, K, S = cols.shape
    Cout = w.shape[0]
    blk = Cout * K * 2 + 3 * Cout * 4 + K * S * 2 + Cout * S * 4
    return pl.pallas_call(
        conv_in_lrelu_kernel,
        out_shape=jax.ShapeDtypeStruct((N, Cout, S), jnp.float32),
        grid=(N,),
        in_specs=[
            pl.BlockSpec((Cout, K), lambda n: (0, 0)),          # weights (resident)
            pl.BlockSpec((Cout, 1), lambda n: (0, 0)),          # bias
            pl.BlockSpec((Cout, 1), lambda n: (0, 0)),          # gamma
            pl.BlockSpec((Cout, 1), lambda n: (0, 0)),          # beta
            pl.BlockSpec((None, K, S), lambda n: (n, 0, 0)),    # per-sample cols
        ],
        out_specs=pl.BlockSpec((None, Cout, S), lambda n: (n, 0, 0)),
        compiler_params=_cparams(blk),
        cost_estimate=pl.CostEstimate(
            flops=2 * N * Cout * K * S,
            transcendentals=N * Cout,                           # rsqrt per (n, c)
            bytes_accessed=N * (K * S * 2 + Cout * S * 4) + Cout * K * 2),
    )(w, _col(b, Cout), _col(g, Cout), _col(beta, Cout), cols)


def att_gate(x, w, b):
    """x + sigmoid(conv1x1(x)). x: (N, C, S) f32; w: (C, C) bf16; b: (C,) f32."""
    N, C, S = x.shape
    blk = C * C * 2 + C * 4 + 2 * C * S * 4
    return pl.pallas_call(
        att_gate_kernel,
        out_shape=jax.ShapeDtypeStruct((N, C, S), jnp.float32),
        grid=(N,),
        in_specs=[
            pl.BlockSpec((C, C), lambda n: (0, 0)),
            pl.BlockSpec((C, 1), lambda n: (0, 0)),
            pl.BlockSpec((None, C, S), lambda n: (n, 0, 0)),
        ],
        out_specs=pl.BlockSpec((None, C, S), lambda n: (n, 0, 0)),
        compiler_params=_cparams(blk),
        cost_estimate=pl.CostEstimate(
            flops=2 * N * C * C * S + 4 * N * C * S,
            transcendentals=2 * N * C * S,                      # exp + reciprocal
            bytes_accessed=2 * N * C * S * 4 + C * C * 2),
    )(w, _col(b, C), x)


def conv_transpose2x2(x, w4, b):
    """ConvTranspose2d(k=2, s=2) as one GEMM per sample.
    x: (N, Cin, S) f32; w4: (4*Cout, Cin) bf16, row = (di*2+dj)*Cout + co;
    b: (Cout,) f32. Returns (N, 4*Cout, S) f32 (pixel shuffle deferred)."""
    N, Cin, S = x.shape
    R = w4.shape[0]                                             # 4*Cout
    b4 = jnp.tile(b, 4)                                         # row q*Cout+co -> b[co]
    blk = R * Cin * 2 + R * 4 + Cin * S * 4 + R * S * 4
    return pl.pallas_call(
        convt_kernel,
        out_shape=jax.ShapeDtypeStruct((N, R, S), jnp.float32),
        grid=(N,),
        in_specs=[
            pl.BlockSpec((R, Cin), lambda n: (0, 0)),
            pl.BlockSpec((R, 1), lambda n: (0, 0)),
            pl.BlockSpec((None, Cin, S), lambda n: (n, 0, 0)),
        ],
        out_specs=pl.BlockSpec((None, R, S), lambda n: (n, 0, 0)),
        compiler_params=_cparams(blk),
        cost_estimate=pl.CostEstimate(
            flops=2 * N * R * Cin * S,
            transcendentals=0,
            bytes_accessed=N * (Cin * S * 4 + R * S * 4) + R * Cin * 2),
    )(w4, _col(b4, R), x)


def up_block_with_head(cols_up, cols_skip, wu, ws, b, g, beta, hw, hb):
    """Upsample conv block (concat eliminated) + fused deep-supervision head.
    cols_*: (N, K, S) bf16; wu/ws: (Cout, K) bf16; hw: (ncls, Cout) bf16."""
    N, K, S = cols_up.shape
    Cout = wu.shape[0]
    ncls = hw.shape[0]
    blk = (2 * Cout * K * 2 + 3 * Cout * 4 + ncls * Cout * 2 + ncls * 4
           + 2 * K * S * 2 + Cout * S * 4 + ncls * S * 4)
    return pl.pallas_call(
        up_block_head_kernel,
        out_shape=(jax.ShapeDtypeStruct((N, Cout, S), jnp.float32),
                   jax.ShapeDtypeStruct((N, ncls, S), jnp.float32)),
        grid=(N,),
        in_specs=[
            pl.BlockSpec((Cout, K), lambda n: (0, 0)),          # W for the "up" half
            pl.BlockSpec((Cout, K), lambda n: (0, 0)),          # W for the "skip" half
            pl.BlockSpec((Cout, 1), lambda n: (0, 0)),          # bias
            pl.BlockSpec((Cout, 1), lambda n: (0, 0)),          # gamma
            pl.BlockSpec((Cout, 1), lambda n: (0, 0)),          # beta
            pl.BlockSpec((ncls, Cout), lambda n: (0, 0)),       # head weight
            pl.BlockSpec((ncls, 1), lambda n: (0, 0)),          # head bias
            pl.BlockSpec((None, K, S), lambda n: (n, 0, 0)),    # cols of upsampled
            pl.BlockSpec((None, K, S), lambda n: (n, 0, 0)),    # cols of skip
        ],
        out_specs=(pl.BlockSpec((None, Cout, S), lambda n: (n, 0, 0)),
                   pl.BlockSpec((None, ncls, S), lambda n: (n, 0, 0))),
        compiler_params=_cparams(blk),
        cost_estimate=pl.CostEstimate(
            flops=2 * N * S * (2 * Cout * K + ncls * Cout),
            transcendentals=N * Cout,
            bytes_accessed=N * (2 * K * S * 2 + (Cout + ncls) * S * 4)
                           + 2 * Cout * K * 2),
    )(wu, ws, _col(b, Cout), _col(g, Cout), _col(beta, Cout),
      hw, _col(hb, ncls), cols_up, cols_skip)


# ------------------------------ conv helpers -------------------------------

def im2col_t(x, k, stride, pad):
    """x: (N, C, H, W) -> (N, k*k*C, OH*OW) bf16 with K index = (di*k+dj)*C + c.
    Transposed (spatial-on-lanes) im2col; cheap strided slices that XLA fuses
    with the pad / preceding layout op. TODO(synk): move this gather into the
    conv kernel (halo BlockSpec + shifted pl.ds reads) at production sizes."""
    xp = jnp.pad(x, ((0, 0), (0, 0), (pad, pad), (pad, pad)))
    N, C, Hp, Wp = xp.shape
    OH = (Hp - k) // stride + 1
    OW = (Wp - k) // stride + 1
    taps = [xp[:, :, di:di + stride * OH:stride, dj:dj + stride * OW:stride]
            for di in range(k) for dj in range(k)]
    cols = jnp.concatenate(taps, axis=1)                        # (N, k*k*C, OH, OW)
    return cols.reshape(N, k * k * C, OH * OW).astype(jnp.bfloat16), (OH, OW)


# ------------------------------ parameters ---------------------------------

def init_params(key, cin=4, c1=8, c2=16, n_classes=2):
    ks = jax.random.split(key, 12)

    def wmat(k, shape, scale=0.1):
        return (scale * jax.random.normal(k, shape, jnp.float32)).astype(jnp.bfloat16)

    def vec(k, n, scale=0.1):
        return scale * jax.random.normal(k, (n,), jnp.float32)

    return dict(
        # downsample: Conv3x3/s2 (+IN affine), weight layout (Cout, 9*Cin)
        down_w=wmat(ks[0], (c1, 9 * cin)), down_b=vec(ks[1], c1),
        down_g=jnp.ones((c1,), jnp.float32), down_beta=jnp.zeros((c1,), jnp.float32),
        # attention gate: 1x1 conv
        att_w=wmat(ks[2], (c1, c1)), att_b=vec(ks[3], c1),
        # bottleneck: Conv3x3/s2
        bot_w=wmat(ks[4], (c2, 9 * c1)), bot_b=vec(ks[5], c2),
        bot_g=jnp.ones((c2,), jnp.float32), bot_beta=jnp.zeros((c2,), jnp.float32),
        # transposed conv 2x2/s2: rows = (di*2+dj)*c1 + co
        upT_w=wmat(ks[6], (4 * c1, c2)), upT_b=vec(ks[7], c1),
        # up conv, weight split into the "up" and "skip" halves of the concat
        up_wu=wmat(ks[8], (c1, 9 * c1)), up_ws=wmat(ks[9], (c1, 9 * c1)),
        up_b=vec(ks[10], c1),
        up_g=jnp.ones((c1,), jnp.float32), up_beta=jnp.zeros((c1,), jnp.float32),
        # deep-supervision head: 1x1 conv to n_classes
        head_w=wmat(ks[11], (n_classes, c1)),
        head_b=jnp.zeros((n_classes,), jnp.float32),
    )


# ------------------------------ forward pass --------------------------------

def skip_layer_forward(params, x_nchw):
    x = x_nchw.astype(jnp.float32)                 # NCHW is already channels-first
    N, Cin, H, W = x.shape
    C1 = params["down_w"].shape[0]
    C2 = params["bot_w"].shape[0]

    # downout = self.downsample(x)   -- fused conv + IN + LReLU
    cols_d, (H1, W1) = im2col_t(x, 3, 2, 1)
    down = conv_in_lrelu(cols_d, params["down_w"], params["down_b"],
                         params["down_g"], params["down_beta"])      # (N, C1, H1*W1)

    # att = self.attention(downout); downout = downout + att  -- fused gate
    down = att_gate(down, params["att_w"], params["att_b"])

    # nextout = self.next_layer(downout)   (bottleneck)
    cols_b, (H2, W2) = im2col_t(down.reshape(N, C1, H1, W1), 3, 2, 1)
    bott = conv_in_lrelu(cols_b, params["bot_w"], params["bot_b"],
                         params["bot_g"], params["bot_beta"])        # (N, C2, H2*W2)

    # upout = self.upsample(nextout, downout)
    up4 = conv_transpose2x2(bott, params["upT_w"], params["upT_b"])  # (N, 4*C1, H2*W2)
    # Pixel shuffle is pure layout; XLA fuses it into the following im2col gather.
    up = (up4.reshape(N, 2, 2, C1, H2, W2)
             .transpose(0, 3, 4, 1, 5, 2)
             .reshape(N, C1, 2 * H2, 2 * W2))                        # (N, C1, H1, W1)
    cols_u, _ = im2col_t(up, 3, 1, 1)
    cols_s, _ = im2col_t(down.reshape(N, C1, H1, W1), 3, 1, 1)
    # Concat eliminated; deep-supervision head fused in the same kernel.
    upout, head = up_block_with_head(
        cols_u, cols_s, params["up_wu"], params["up_ws"], params["up_b"],
        params["up_g"], params["up_beta"], params["head_w"], params["head_b"])

    upout = upout.reshape(N, C1, H1, W1)           # NCHW, matches PyTorch output
    head = head.reshape(N, -1, H1, W1)
    return upout, head


# ---------------------------------- main -------------------------------------

if __name__ == "__main__":
    key = jax.random.PRNGKey(0)
    pkey, xkey = jax.random.split(key)
    params = init_params(pkey)
    x = jax.random.normal(xkey, (2, 4, 16, 16), dtype=jnp.float32)   # NCHW

    index = 1
    heads = [None]   # shared deep-supervision heads list

    upout, head = jax.jit(skip_layer_forward)(params, x)
    if index > 0:
        heads[index - 1] = head      # self.heads[self.index - 1] = super_head(upout)

    jax.block_until_ready(upout)
    jax.block_until_ready(heads[0])

    assert upout.shape == (2, 8, 8, 8)        # (N, C1, H/2, W/2)
    assert heads[0].shape == (2, 2, 8, 8)     # (N, n_classes, H/2, W/2)
    assert bool(jnp.all(jnp.isfinite(upout)))
    assert bool(jnp.all(jnp.isfinite(heads[0])))
    print("KERNEL_OK")
</pallas_src>

<mosaic_0001>
module attributes {stable_mosaic.version = 11 : i64} {
  func.func @conv_in_lrelu_kernel(%arg0: i32, %arg1: memref<8x36xbf16, #tpu.memory_space<vmem>>, %arg2: memref<8x1xf32, #tpu.memory_space<vmem>>, %arg3: memref<8x1xf32, #tpu.memory_space<vmem>>, %arg4: memref<8x1xf32, #tpu.memory_space<vmem>>, %arg5: memref<1x36x64xbf16, #tpu.memory_space<vmem>>, %arg6: memref<1x8x64xf32, #tpu.memory_space<vmem>>) attributes {dimension_semantics = [#tpu.dimension_semantics<parallel>], iteration_bounds = array<i64: 2>, scalar_prefetch = 0 : i64, scratch_operands = 0 : i64, tpu.core_type = #tpu.core_type<tc>, window_params = [{pipeline_mode = #tpu.pipeline_mode<synchronous>, transform_indices = @transform_0, window_bounds = array<i64: 8, 36>}, {pipeline_mode = #tpu.pipeline_mode<synchronous>, transform_indices = @transform_1, window_bounds = array<i64: 8, 1>}, {pipeline_mode = #tpu.pipeline_mode<synchronous>, transform_indices = @transform_2, window_bounds = array<i64: 8, 1>}, {pipeline_mode = #tpu.pipeline_mode<synchronous>, transform_indices = @transform_3, window_bounds = array<i64: 8, 1>}, {transform_indices = @transform_4, window_bounds = array<i64: 1, 36, 64>}, {transform_indices = @transform_5, window_bounds = array<i64: 1, 8, 64>}]} {
    %c0 = arith.constant 0 : index
    %c0_0 = arith.constant 0 : index
    %0 = vector.load %arg1[%c0, %c0_0] : memref<8x36xbf16, #tpu.memory_space<vmem>>, vector<8x36xbf16>
    %c0_1 = arith.constant 0 : index
    %c0_2 = arith.constant 0 : index
    %c0_3 = arith.constant 0 : index
    %1 = vector.load %arg5[%c0_1, %c0_2, %c0_3] : memref<1x36x64xbf16, #tpu.memory_space<vmem>>, vector<1x36x64xbf16>
    %2 = vector.shape_cast %1 : vector<1x36x64xbf16> to vector<36x64xbf16>
    %cst = arith.constant dense<0.000000e+00> : vector<8x64xf32>
    %3 = tpu.matmul %0, %2, %cst {dimension_numbers = #tpu.dot_dimension_numbers<[1], [0], [0], [1], [0, 0, 1, 1], [], []>} : vector<8x36xbf16>, vector<36x64xbf16>, vector<8x64xf32> -> vector<8x64xf32>
    %c0_4 = arith.constant 0 : index
    %c0_5 = arith.constant 0 : index
    %4 = vector.load %arg2[%c0_4, %c0_5] : memref<8x1xf32, #tpu.memory_space<vmem>>, vector<8x1xf32>
    %5 = vector.broadcast %4 : vector<8x1xf32> to vector<8x64xf32>
    %6 = arith.addf %3, %5 : vector<8x64xf32>
    %cst_6 = arith.constant dense<0.000000e+00> : vector<8xf32>
    %7 = vector.multi_reduction <add>, %6, %cst_6 [1] : vector<8x64xf32> to vector<8xf32>
    %8 = vector.shape_cast %7 : vector<8xf32> to vector<8x1xf32>
    %cst_7 = arith.constant 6.400000e+01 : f32
    %9 = vector.broadcast %cst_7 : f32 to vector<8x1xf32>
    %10 = arith.divf %8, %9 : vector<8x1xf32>
    %11 = vector.broadcast %10 : vector<8x1xf32> to vector<8x64xf32>
    %12 = arith.subf %6, %11 : vector<8x64xf32>
    %13 = arith.mulf %12, %12 : vector<8x64xf32>
    %cst_8 = arith.constant dense<0.000000e+00> : vector<8xf32>
    %14 = vector.multi_reduction <add>, %13, %cst_8 [1] : vector<8x64xf32> to vector<8xf32>
    %15 = vector.shape_cast %14 : vector<8xf32> to vector<8x1xf32>
    %cst_9 = arith.constant 6.400000e+01 : f32
    %16 = vector.broadcast %cst_9 : f32 to vector<8x1xf32>
    %17 = arith.divf %15, %16 : vector<8x1xf32>
    %18 = vector.broadcast %10 : vector<8x1xf32> to vector<8x64xf32>
    %19 = arith.subf %6, %18 : vector<8x64xf32>
    %cst_10 = arith.constant 9.99999974E-6 : f32
    %20 = vector.broadcast %cst_10 : f32 to vector<8x1xf32>
    %21 = arith.addf %17, %20 : vector<8x1xf32>
    %22 = math.rsqrt %21 : vector<8x1xf32>
    %23 = vector.broadcast %22 : vector<8x1xf32> to vector<8x64xf32>
    %24 = arith.mulf %19, %23 : vector<8x64xf32>
    %c0_11 = arith.constant 0 : index
    %c0_12 = arith.constant 0 : index
    %25 = vector.load %arg3[%c0_11, %c0_12] : memref<8x1xf32, #tpu.memory_space<vmem>>, vector<8x1xf32>
    %26 = vector.broadcast %25 : vector<8x1xf32> to vector<8x64xf32>
    %27 = arith.mulf %24, %26 : vector<8x64xf32>
    %c0_13 = arith.constant 0 : index
    %c0_14 = arith.constant 0 : index
    %28 = vector.load %arg4[%c0_13, %c0_14] : memref<8x1xf32, #tpu.memory_space<vmem>>, vector<8x1xf32>
    %29 = vector.broadcast %28 : vector<8x1xf32> to vector<8x64xf32>
    %30 = arith.addf %27, %29 : vector<8x64xf32>
    %cst_15 = arith.constant 0.000000e+00 : f32
    %31 = vector.broadcast %cst_15 : f32 to vector<8x64xf32>
    %32 = arith.cmpf oge, %30, %31 : vector<8x64xf32>
    %cst_16 = arith.constant 0.00999999977 : f32
    %33 = vector.broadcast %cst_16 : f32 to vector<8x64xf32>
    %34 = arith.mulf %33, %30 : vector<8x64xf32>
    %35 = arith.select %32, %30, %34 : vector<8x64xi1>, vector<8x64xf32>
    %c0_17 = arith.constant 0 : index
    %c0_18 = arith.constant 0 : index
    %c0_19 = arith.constant 0 : index
    %36 = vector.load %arg6[%c0_17, %c0_18, %c0_19] : memref<1x8x64xf32, #tpu.memory_space<vmem>>, vector<1x8x64xf32>
    %37 = vector.shape_cast %36 : vector<1x8x64xf32> to vector<8x64xf32>
    %38 = vector.shape_cast %35 : vector<8x64xf32> to vector<1x8x64xf32>
    tpu.vector_store %arg6[%c0_17, %c0_18, %c0_19], %38 {strides = array<i32>} : memref<1x8x64xf32, #tpu.memory_space<vmem>>, vector<1x8x64xf32>,
    return
  }
  func.func @transform_0(%arg0: i32) -> (i32, i32) {
    %c0_i32 = arith.constant 0 : i32
    %c0_i32_0 = arith.constant 0 : i32
    %c0_i32_1 = arith.constant 0 : i32
    return %c0_i32, %c0_i32_0 : i32, i32
  }
  func.func @transform_1(%arg0: i32) -> (i32, i32) {
    %c0_i32 = arith.constant 0 : i32
    %c0_i32_0 = arith.constant 0 : i32
    %c0_i32_1 = arith.constant 0 : i32
    return %c0_i32, %c0_i32_0 : i32, i32
  }
  func.func @transform_2(%arg0: i32) -> (i32, i32) {
    %c0_i32 = arith.constant 0 : i32
    %c0_i32_0 = arith.constant 0 : i32
    %c0_i32_1 = arith.constant 0 : i32
    return %c0_i32, %c0_i32_0 : i32, i32
  }
  func.func @transform_3(%arg0: i32) -> (i32, i32) {
    %c0_i32 = arith.constant 0 : i32
    %c0_i32_0 = arith.constant 0 : i32
    %c0_i32_1 = arith.constant 0 : i32
    return %c0_i32, %c0_i32_0 : i32, i32
  }
  func.func @transform_4(%arg0: i32) -> (i32, i32, i32) {
    %c0_i32 = arith.constant 0 : i32
    %c0_i32_0 = arith.constant 0 : i32
    %c0_i32_1 = arith.constant 0 : i32
    return %arg0, %c0_i32, %c0_i32_0 : i32, i32, i32
  }
  func.func @transform_5(%arg0: i32) -> (i32, i32, i32) {
    %c0_i32 = arith.constant 0 : i32
    %c0_i32_0 = arith.constant 0 : i32
    %c0_i32_1 = arith.constant 0 : i32
    return %arg0, %c0_i32, %c0_i32_0 : i32, i32, i32
  }
}

module attributes {stable_mosaic.version = 11 : i64} {
  func.func @att_gate_kernel(%arg0: i32, %arg1: memref<8x8xbf16, #tpu.memory_space<vmem>>, %arg2: memref<8x1xf32, #tpu.memory_space<vmem>>, %arg3: memref<1x8x64xf32, #tpu.memory_space<vmem>>, %arg4: memref<1x8x64xf32, #tpu.memory_space<vmem>>) attributes {dimension_semantics = [#tpu.dimension_semantics<parallel>], iteration_bounds = array<i64: 2>, scalar_prefetch = 0 : i64, scratch_operands = 0 : i64, tpu.core_type = #tpu.core_type<tc>, window_params = [{pipeline_mode = #tpu.pipeline_mode<synchronous>, transform_indices = @transform_0, window_bounds = array<i64: 8, 8>}, {pipeline_mode = #tpu.pipeline_mode<synchronous>, transform_indices = @transform_1, window_bounds = array<i64: 8, 1>}, {transform_indices = @transform_2, window_bounds = array<i64: 1, 8, 64>}, {transform_indices = @transform_3, window_bounds = array<i64: 1, 8, 64>}]} {
    %c0 = arith.constant 0 : index
    %c0_0 = arith.constant 0 : index
    %c0_1 = arith.constant 0 : index
    %0 = vector.load %arg3[%c0, %c0_0, %c0_1] : memref<1x8x64xf32, #tpu.memory_space<vmem>>, vector<1x8x64xf32>
    %1 = vector.shape_cast %0 : vector<1x8x64xf32> to vector<8x64xf32>
    %c0_2 = arith.constant 0 : index
    %c0_3 = arith.constant 0 : index
    %2 = vector.load %arg1[%c0_2, %c0_3] : memref<8x8xbf16, #tpu.memory_space<vmem>>, vector<8x8xbf16>
    %3 = arith.truncf %1 : vector<8x64xf32> to vector<8x64xbf16>
    %cst = arith.constant dense<0.000000e+00> : vector<8x64xf32>
    %4 = tpu.matmul %2, %3, %cst {dimension_numbers = #tpu.dot_dimension_numbers<[1], [0], [0], [1], [0, 0, 1, 1], [], []>} : vector<8x8xbf16>, vector<8x64xbf16>, vector<8x64xf32> -> vector<8x64xf32>
    %c0_4 = arith.constant 0 : index
    %c0_5 = arith.constant 0 : index
    %5 = vector.load %arg2[%c0_4, %c0_5] : memref<8x1xf32, #tpu.memory_space<vmem>>, vector<8x1xf32>
    %6 = vector.broadcast %5 : vector<8x1xf32> to vector<8x64xf32>
    %7 = arith.addf %4, %6 : vector<8x64xf32>
    %cst_6 = arith.constant -3.000000e+01 : f32
    %cst_7 = arith.constant 3.000000e+01 : f32
    %8 = vector.broadcast %cst_6 : f32 to vector<8x64xf32>
    %9 = arith.maximumf %8, %7 : vector<8x64xf32>
    %10 = vector.broadcast %cst_7 : f32 to vector<8x64xf32>
    %11 = arith.minimumf %10, %9 : vector<8x64xf32>
    %cst_8 = arith.constant 0.000000e+00 : f32
    %12 = vector.broadcast %cst_8 : f32 to vector<8x64xf32>
    %13 = arith.subf %12, %11 : vector<8x64xf32>
    %14 = math.exp %13 : vector<8x64xf32>
    %cst_9 = arith.constant 1.000000e+00 : f32
    %15 = vector.broadcast %cst_9 : f32 to vector<8x64xf32>
    %16 = arith.addf %15, %14 : vector<8x64xf32>
    %17 = tpu.reciprocal %16 {approx = true} : vector<8x64xf32> -> vector<8x64xf32>
    %18 = arith.addf %1, %17 : vector<8x64xf32>
    %c0_10 = arith.constant 0 : index
    %c0_11 = arith.constant 0 : index
    %c0_12 = arith.constant 0 : index
    %19 = vector.load %arg4[%c0_10, %c0_11, %c0_12] : memref<1x8x64xf32, #tpu.memory_space<vmem>>, vector<1x8x64xf32>
    %20 = vector.shape_cast %19 : vector<1x8x64xf32> to vector<8x64xf32>
    %21 = vector.shape_cast %18 : vector<8x64xf32> to vector<1x8x64xf32>
    tpu.vector_store %arg4[%c0_10, %c0_11, %c0_12], %21 {strides = array<i32>} : memref<1x8x64xf32, #tpu.memory_space<vmem>>, vector<1x8x64xf32>,
    return
  }
  func.func @transform_0(%arg0: i32) -> (i32, i32) {
    %c0_i32 = arith.constant 0 : i32
    %c0_i32_0 = arith.constant 0 : i32
    %c0_i32_1 = arith.constant 0 : i32
    return %c0_i32, %c0_i32_0 : i32, i32
  }
  func.func @transform_1(%arg0: i32) -> (i32, i32) {
    %c0_i32 = arith.constant 0 : i32
    %c0_i32_0 = arith.constant 0 : i32
    %c0_i32_1 = arith.constant 0 : i32
    return %c0_i32, %c0_i32_0 : i32, i32
  }
  func.func @transform_2(%arg0: i32) -> (i32, i32, i32) {
    %c0_i32 = arith.constant 0 : i32
    %c0_i32_0 = arith.constant 0 : i32
    %c0_i32_1 = arith.constant 0 : i32
    return %arg0, %c0_i32, %c0_i32_0 : i32, i32, i32
  }
  func.func @transform_3(%arg0: i32) -> (i32, i32, i32) {
    %c0_i32 = arith.constant 0 : i32
    %c0_i32_0 = arith.constant 0 : i32
    %c0_i32_1 = arith.constant 0 : i32
    return %arg0, %c0_i32, %c0_i32_0 : i32, i32, i32
  }
}

module attributes {stable_mosaic.version = 11 : i64} {
  func.func @conv_in_lrelu_kernel(%arg0: i32, %arg1: memref<16x72xbf16, #tpu.memory_space<vmem>>, %arg2: memref<16x1xf32, #tpu.memory_space<vmem>>, %arg3: memref<16x1xf32, #tpu.memory_space<vmem>>, %arg4: memref<16x1xf32, #tpu.memory_space<vmem>>, %arg5: memref<1x72x16xbf16, #tpu.memory_space<vmem>>, %arg6: memref<1x16x16xf32, #tpu.memory_space<vmem>>) attributes {dimension_semantics = [#tpu.dimension_semantics<parallel>], iteration_bounds = array<i64: 2>, scalar_prefetch = 0 : i64, scratch_operands = 0 : i64, tpu.core_type = #tpu.core_type<tc>, window_params = [{pipeline_mode = #tpu.pipeline_mode<synchronous>, transform_indices = @transform_0, window_bounds = array<i64: 16, 72>}, {pipeline_mode = #tpu.pipeline_mode<synchronous>, transform_indices = @transform_1, window_bounds = array<i64: 16, 1>}, {pipeline_mode = #tpu.pipeline_mode<synchronous>, transform_indices = @transform_2, window_bounds = array<i64: 16, 1>}, {pipeline_mode = #tpu.pipeline_mode<synchronous>, transform_indices = @transform_3, window_bounds = array<i64: 16, 1>}, {transform_indices = @transform_4, window_bounds = array<i64: 1, 72, 16>}, {transform_indices = @transform_5, window_bounds = array<i64: 1, 16, 16>}]} {
    %c0 = arith.constant 0 : index
    %c0_0 = arith.constant 0 : index
    %0 = vector.load %arg1[%c0, %c0_0] : memref<16x72xbf16, #tpu.memory_space<vmem>>, vector<16x72xbf16>
    %c0_1 = arith.constant 0 : index
    %c0_2 = arith.constant 0 : index
    %c0_3 = arith.constant 0 : index
    %1 = vector.load %arg5[%c0_1, %c0_2, %c0_3] : memref<1x72x16xbf16, #tpu.memory_space<vmem>>, vector<1x72x16xbf16>
    %2 = vector.shape_cast %1 : vector<1x72x16xbf16> to vector<72x16xbf16>
    %cst = arith.constant dense<0.000000e+00> : vector<16x16xf32>
    %3 = tpu.matmul %0, %2, %cst {dimension_numbers = #tpu.dot_dimension_numbers<[1], [0], [0], [1], [0, 0, 1, 1], [], []>} : vector<16x72xbf16>, vector<72x16xbf16>, vector<16x16xf32> -> vector<16x16xf32>
    %c0_4 = arith.constant 0 : index
    %c0_5 = arith.constant 0 : index
    %4 = vector.load %arg2[%c0_4, %c0_5] : memref<16x1xf32, #tpu.memory_space<vmem>>, vector<16x1xf32>
    %5 = vector.broadcast %4 : vector<16x1xf32> to vector<16x16xf32>
    %6 = arith.addf %3, %5 : vector<16x16xf32>
    %cst_6 = arith.constant dense<0.000000e+00> : vector<16xf32>
    %7 = vector.multi_reduction <add>, %6, %cst_6 [1] : vector<16x16xf32> to vector<16xf32>
    %8 = vector.shape_cast %7 : vector<16xf32> to vector<16x1xf32>
    %cst_7 = arith.constant 1.600000e+01 : f32
    %9 = vector.broadcast %cst_7 : f32 to vector<16x1xf32>
    %10 = arith.divf %8, %9 : vector<16x1xf32>
    %11 = vector.broadcast %10 : vector<16x1xf32> to vector<16x16xf32>
    %12 = arith.subf %6, %11 : vector<16x16xf32>
    %13 = arith.mulf %12, %12 : vector<16x16xf32>
    %cst_8 = arith.constant dense<0.000000e+00> : vector<16xf32>
    %14 = vector.multi_reduction <add>, %13, %cst_8 [1] : vector<16x16xf32> to vector<16xf32>
    %15 = vector.shape_cast %14 : vector<16xf32> to vector<16x1xf32>
    %cst_9 = arith.constant 1.600000e+01 : f32
    %16 = vector.broadcast %cst_9 : f32 to vector<16x1xf32>
    %17 = arith.divf %15, %16 : vector<16x1xf32>
    %18 = vector.broadcast %10 : vector<16x1xf32> to vector<16x16xf32>
    %19 = arith.subf %6, %18 : vector<16x16xf32>
    %cst_10 = arith.constant 9.99999974E-6 : f32
    %20 = vector.broadcast %cst_10 : f32 to vector<16x1xf32>
    %21 = arith.addf %17, %20 : vector<16x1xf32>
    %22 = math.rsqrt %21 : vector<16x1xf32>
    %23 = vector.broadcast %22 : vector<16x1xf32> to vector<16x16xf32>
    %24 = arith.mulf %19, %23 : vector<16x16xf32>
    %c0_11 = arith.constant 0 : index
    %c0_12 = arith.constant 0 : index
    %25 = vector.load %arg3[%c0_11, %c0_12] : memref<16x1xf32, #tpu.memory_space<vmem>>, vector<16x1xf32>
    %26 = vector.broadcast %25 : vector<16x1xf32> to vector<16x16xf32>
    %27 = arith.mulf %24, %26 : vector<16x16xf32>
    %c0_13 = arith.constant 0 : index
    %c0_14 = arith.constant 0 : index
    %28 = vector.load %arg4[%c0_13, %c0_14] : memref<16x1xf32, #tpu.memory_space<vmem>>, vector<16x1xf32>
    %29 = vector.broadcast %28 : vector<16x1xf32> to vector<16x16xf32>
    %30 = arith.addf %27, %29 : vector<16x16xf32>
    %cst_15 = arith.constant 0.000000e+00 : f32
    %31 = vector.broadcast %cst_15 : f32 to vector<16x16xf32>
    %32 = arith.cmpf oge, %30, %31 : vector<16x16xf32>
    %cst_16 = arith.constant 0.00999999977 : f32
    %33 = vector.broadcast %cst_16 : f32 to vector<16x16xf32>
    %34 = arith.mulf %33, %30 : vector<16x16xf32>
    %35 = arith.select %32, %30, %34 : vector<16x16xi1>, vector<16x16xf32>
    %c0_17 = arith.constant 0 : index
    %c0_18 = arith.constant 0 : index
    %c0_19 = arith.constant 0 : index
    %36 = vector.load %arg6[%c0_17, %c0_18, %c0_19] : memref<1x16x16xf32, #tpu.memory_space<vmem>>, vector<1x16x16xf32>
    %37 = vector.shape_cast %36 : vector<1x16x16xf32> to vector<16x16xf32>
    %38 = vector.shape_cast %35 : vector<16x16xf32> to vector<1x16x16xf32>
    tpu.vector_store %arg6[%c0_17, %c0_18, %c0_19], %38 {strides = array<i32>} : memref<1x16x16xf32, #tpu.memory_space<vmem>>, vector<1x16x16xf32>,
    return
  }
  func.func @transform_0(%arg0: i32) -> (i32, i32) {
    %c0_i32 = arith.constant 0 : i32
    %c0_i32_0 = arith.constant 0 : i32
    %c0_i32_1 = arith.constant 0 : i32
    return %c0_i32, %c0_i32_0 : i32, i32
  }
  func.func @transform_1(%arg0: i32) -> (i32, i32) {
    %c0_i32 = arith.constant 0 : i32
    %c0_i32_0 = arith.constant 0 : i32
    %c0_i32_1 = arith.constant 0 : i32
    return %c0_i32, %c0_i32_0 : i32, i32
  }
  func.func @transform_2(%arg0: i32) -> (i32, i32) {
    %c0_i32 = arith.constant 0 : i32
    %c0_i32_0 = arith.constant 0 : i32
    %c0_i32_1 = arith.constant 0 : i32
    return %c0_i32, %c0_i32_0 : i32, i32
  }
  func.func @transform_3(%arg0: i32) -> (i32, i32) {
    %c0_i32 = arith.constant 0 : i32
    %c0_i32_0 = arith.constant 0 : i32
    %c0_i32_1 = arith.constant 0 : i32
    return %c0_i32, %c0_i32_0 : i32, i32
  }
  func.func @transform_4(%arg0: i32) -> (i32, i32, i32) {
    %c0_i32 = arith.constant 0 : i32
    %c0_i32_0 = arith.constant 0 : i32
    %c0_i32_1 = arith.constant 0 : i32
    return %arg0, %c0_i32, %c0_i32_0 : i32, i32, i32
  }
  func.func @transform_5(%arg0: i32) -> (i32, i32, i32) {
    %c0_i32 = arith.constant 0 : i32
    %c0_i32_0 = arith.constant 0 : i32
    %c0_i32_1 = arith.constant 0 : i32
    return %arg0, %c0_i32, %c0_i32_0 : i32, i32, i32
  }
}

module attributes {stable_mosaic.version = 11 : i64} {
  func.func @convt_kernel(%arg0: i32, %arg1: memref<32x16xbf16, #tpu.memory_space<vmem>>, %arg2: memref<32x1xf32, #tpu.memory_space<vmem>>, %arg3: memref<1x16x16xf32, #tpu.memory_space<vmem>>, %arg4: memref<1x32x16xf32, #tpu.memory_space<vmem>>) attributes {dimension_semantics = [#tpu.dimension_semantics<parallel>], iteration_bounds = array<i64: 2>, scalar_prefetch = 0 : i64, scratch_operands = 0 : i64, tpu.core_type = #tpu.core_type<tc>, window_params = [{pipeline_mode = #tpu.pipeline_mode<synchronous>, transform_indices = @transform_0, window_bounds = array<i64: 32, 16>}, {pipeline_mode = #tpu.pipeline_mode<synchronous>, transform_indices = @transform_1, window_bounds = array<i64: 32, 1>}, {transform_indices = @transform_2, window_bounds = array<i64: 1, 16, 16>}, {transform_indices = @transform_3, window_bounds = array<i64: 1, 32, 16>}]} {
    %c0 = arith.constant 0 : index
    %c0_0 = arith.constant 0 : index
    %0 = vector.load %arg1[%c0, %c0_0] : memref<32x16xbf16, #tpu.memory_space<vmem>>, vector<32x16xbf16>
    %c0_1 = arith.constant 0 : index
    %c0_2 = arith.constant 0 : index
    %c0_3 = arith.constant 0 : index
    %1 = vector.load %arg3[%c0_1, %c0_2, %c0_3] : memref<1x16x16xf32, #tpu.memory_space<vmem>>, vector<1x16x16xf32>
    %2 = vector.shape_cast %1 : vector<1x16x16xf32> to vector<16x16xf32>
    %3 = arith.truncf %2 : vector<16x16xf32> to vector<16x16xbf16>
    %cst = arith.constant dense<0.000000e+00> : vector<32x16xf32>
    %4 = tpu.matmul %0, %3, %cst {dimension_numbers = #tpu.dot_dimension_numbers<[1], [0], [0], [1], [0, 0, 1, 1], [], []>} : vector<32x16xbf16>, vector<16x16xbf16>, vector<32x16xf32> -> vector<32x16xf32>
    %c0_4 = arith.constant 0 : index
    %c0_5 = arith.constant 0 : index
    %5 = vector.load %arg2[%c0_4, %c0_5] : memref<32x1xf32, #tpu.memory_space<vmem>>, vector<32x1xf32>
    %6 = vector.broadcast %5 : vector<32x1xf32> to vector<32x16xf32>
    %7 = arith.addf %4, %6 : vector<32x16xf32>
    %c0_6 = arith.constant 0 : index
    %c0_7 = arith.constant 0 : index
    %c0_8 = arith.constant 0 : index
    %8 = vector.load %arg4[%c0_6, %c0_7, %c0_8] : memref<1x32x16xf32, #tpu.memory_space<vmem>>, vector<1x32x16xf32>
    %9 = vector.shape_cast %8 : vector<1x32x16xf32> to vector<32x16xf32>
    %10 = vector.shape_cast %7 : vector<32x16xf32> to vector<1x32x16xf32>
    tpu.vector_store %arg4[%c0_6, %c0_7, %c0_8], %10 {strides = array<i32>} : memref<1x32x16xf32, #tpu.memory_space<vmem>>, vector<1x32x16xf32>,
    return
  }
  func.func @transform_0(%arg0: i32) -> (i32, i32) {
    %c0_i32 = arith.constant 0 : i32
    %c0_i32_0 = arith.constant 0 : i32
    %c0_i32_1 = arith.constant 0 : i32
    return %c0_i32, %c0_i32_0 : i32, i32
  }
  func.func @transform_1(%arg0: i32) -> (i32, i32) {
    %c0_i32 = arith.constant 0 : i32
    %c0_i32_0 = arith.constant 0 : i32
    %c0_i32_1 = arith.constant 0 : i32
    return %c0_i32, %c0_i32_0 : i32, i32
  }
  func.func @transform_2(%arg0: i32) -> (i32, i32, i32) {
    %c0_i32 = arith.constant 0 : i32
    %c0_i32_0 = arith.constant 0 : i32
    %c0_i32_1 = arith.constant 0 : i32
    return %arg0, %c0_i32, %c0_i32_0 : i32, i32, i32
  }
  func.func @transform_3(%arg0: i32) -> (i32, i32, i32) {
    %c0_i32 = arith.constant 0 : i32
    %c0_i32_0 = arith.constant 0 : i32
    %c0_i32_1 = arith.constant 0 : i32
    return %arg0, %c0_i32, %c0_i32_0 : i32, i32, i32
  }
}

module attributes {stable_mosaic.version = 11 : i64} {
  func.func @up_block_head_kernel(%arg0: i32, %arg1: memref<8x72xbf16, #tpu.memory_space<vmem>>, %arg2: memref<8x72xbf16, #tpu.memory_space<vmem>>, %arg3: memref<8x1xf32, #tpu.memory_space<vmem>>, %arg4: memref<8x1xf32, #tpu.memory_space<vmem>>, %arg5: memref<8x1xf32, #tpu.memory_space<vmem>>, %arg6: memref<2x8xbf16, #tpu.memory_space<vmem>>, %arg7: memref<2x1xf32, #tpu.memory_space<vmem>>, %arg8: memref<1x72x64xbf16, #tpu.memory_space<vmem>>, %arg9: memref<1x72x64xbf16, #tpu.memory_space<vmem>>, %arg10: memref<1x8x64xf32, #tpu.memory_space<vmem>>, %arg11: memref<1x2x64xf32, #tpu.memory_space<vmem>>) attributes {dimension_semantics = [#tpu.dimension_semantics<parallel>], iteration_bounds = array<i64: 2>, scalar_prefetch = 0 : i64, scratch_operands = 0 : i64, tpu.core_type = #tpu.core_type<tc>, window_params = [{pipeline_mode = #tpu.pipeline_mode<synchronous>, transform_indices = @transform_0, window_bounds = array<i64: 8, 72>}, {pipeline_mode = #tpu.pipeline_mode<synchronous>, transform_indices = @transform_1, window_bounds = array<i64: 8, 72>}, {pipeline_mode = #tpu.pipeline_mode<synchronous>, transform_indices = @transform_2, window_bounds = array<i64: 8, 1>}, {pipeline_mode = #tpu.pipeline_mode<synchronous>, transform_indices = @transform_3, window_bounds = array<i64: 8, 1>}, {pipeline_mode = #tpu.pipeline_mode<synchronous>, transform_indices = @transform_4, window_bounds = array<i64: 8, 1>}, {pipeline_mode = #tpu.pipeline_mode<synchronous>, transform_indices = @transform_5, window_bounds = array<i64: 2, 8>}, {pipeline_mode = #tpu.pipeline_mode<synchronous>, transform_indices = @transform_6, window_bounds = array<i64: 2, 1>}, {transform_indices = @transform_7, window_bounds = array<i64: 1, 72, 64>}, {transform_indices = @transform_8, window_bounds = array<i64: 1, 72, 64>}, {transform_indices = @transform_9, window_bounds = array<i64: 1, 8, 64>}, {transform_indices = @transform_10, window_bounds = array<i64: 1, 2, 64>}]} {
    %c0 = arith.constant 0 : index
    %c0_0 = arith.constant 0 : index
    %0 = vector.load %arg1[%c0, %c0_0] : memref<8x72xbf16, #tpu.memory_space<vmem>>, vector<8x72xbf16>
    %c0_1 = arith.constant 0 : index
    %c0_2 = arith.constant 0 : index
    %c0_3 = arith.constant 0 : index
    %1 = vector.load %arg8[%c0_1, %c0_2, %c0_3] : memref<1x72x64xbf16, #tpu.memory_space<vmem>>, vector<1x72x64xbf16>
    %2 = vector.shape_cast %1 : vector<1x72x64xbf16> to vector<72x64xbf16>
    %cst = arith.constant dense<0.000000e+00> : vector<8x64xf32>
    %3 = tpu.matmul %0, %2, %cst {dimension_numbers = #tpu.dot_dimension_numbers<[1], [0], [0], [1], [0, 0, 1, 1], [], []>} : vector<8x72xbf16>, vector<72x64xbf16>, vector<8x64xf32> -> vector<8x64xf32>
    %c0_4 = arith.constant 0 : index
    %c0_5 = arith.constant 0 : index
    %4 = vector.load %arg2[%c0_4, %c0_5] : memref<8x72xbf16, #tpu.memory_space<vmem>>, vector<8x72xbf16>
    %c0_6 = arith.constant 0 : index
    %c0_7 = arith.constant 0 : index
    %c0_8 = arith.constant 0 : index
    %5 = vector.load %arg9[%c0_6, %c0_7, %c0_8] : memref<1x72x64xbf16, #tpu.memory_space<vmem>>, vector<1x72x64xbf16>
    %6 = vector.shape_cast %5 : vector<1x72x64xbf16> to vector<72x64xbf16>
    %cst_9 = arith.constant dense<0.000000e+00> : vector<8x64xf32>
    %7 = tpu.matmul %4, %6, %cst_9 {dimension_numbers = #tpu.dot_dimension_numbers<[1], [0], [0], [1], [0, 0, 1, 1], [], []>} : vector<8x72xbf16>, vector<72x64xbf16>, vector<8x64xf32> -> vector<8x64xf32>
    %8 = arith.addf %3, %7 : vector<8x64xf32>
    %c0_10 = arith.constant 0 : index
    %c0_11 = arith.constant 0 : index
    %9 = vector.load %arg3[%c0_10, %c0_11] : memref<8x1xf32, #tpu.memory_space<vmem>>, vector<8x1xf32>
    %10 = vector.broadcast %9 : vector<8x1xf32> to vector<8x64xf32>
    %11 = arith.addf %8, %10 : vector<8x64xf32>
    %cst_12 = arith.constant dense<0.000000e+00> : vector<8xf32>
    %12 = vector.multi_reduction <add>, %11, %cst_12 [1] : vector<8x64xf32> to vector<8xf32>
    %13 = vector.shape_cast %12 : vector<8xf32> to vector<8x1xf32>
    %cst_13 = arith.constant 6.400000e+01 : f32
    %14 = vector.broadcast %cst_13 : f32 to vector<8x1xf32>
    %15 = arith.divf %13, %14 : vector<8x1xf32>
    %16 = vector.broadcast %15 : vector<8x1xf32> to vector<8x64xf32>
    %17 = arith.subf %11, %16 : vector<8x64xf32>
    %18 = arith.mulf %17, %17 : vector<8x64xf32>
    %cst_14 = arith.constant dense<0.000000e+00> : vector<8xf32>
    %19 = vector.multi_reduction <add>, %18, %cst_14 [1] : vector<8x64xf32> to vector<8xf32>
    %20 = vector.shape_cast %19 : vector<8xf32> to vector<8x1xf32>
    %cst_15 = arith.constant 6.400000e+01 : f32
    %21 = vector.broadcast %cst_15 : f32 to vector<8x1xf32>
    %22 = arith.divf %20, %21 : vector<8x1xf32>
    %23 = vector.broadcast %15 : vector<8x1xf32> to vector<8x64xf32>
    %24 = arith.subf %11, %23 : vector<8x64xf32>
    %cst_16 = arith.constant 9.99999974E-6 : f32
    %25 = vector.broadcast %cst_16 : f32 to vector<8x1xf32>
    %26 = arith.addf %22, %25 : vector<8x1xf32>
    %27 = math.rsqrt %26 : vector<8x1xf32>
    %28 = vector.broadcast %27 : vector<8x1xf32> to vector<8x64xf32>
    %29 = arith.mulf %24, %28 : vector<8x64xf32>
    %c0_17 = arith.constant 0 : index
    %c0_18 = arith.constant 0 : index
    %30 = vector.load %arg4[%c0_17, %c0_18] : memref<8x1xf32, #tpu.memory_space<vmem>>, vector<8x1xf32>
    %31 = vector.broadcast %30 : vector<8x1xf32> to vector<8x64xf32>
    %32 = arith.mulf %29, %31 : vector<8x64xf32>
    %c0_19 = arith.constant 0 : index
    %c0_20 = arith.constant 0 : index
    %33 = vector.load %arg5[%c0_19, %c0_20] : memref<8x1xf32, #tpu.memory_space<vmem>>, vector<8x1xf32>
    %34 = vector.broadcast %33 : vector<8x1xf32> to vector<8x64xf32>
    %35 = arith.addf %32, %34 : vector<8x64xf32>
    %cst_21 = arith.constant 0.000000e+00 : f32
    %36 = vector.broadcast %cst_21 : f32 to vector<8x64xf32>
    %37 = arith.cmpf oge, %35, %36 : vector<8x64xf32>
    %cst_22 = arith.constant 0.00999999977 : f32
    %38 = vector.broadcast %cst_22 : f32 to vector<8x64xf32>
    %39 = arith.mulf %38, %35 : vector<8x64xf32>
    %40 = arith.select %37, %35, %39 : vector<8x64xi1>, vector<8x64xf32>
    %c0_23 = arith.constant 0 : index
    %c0_24 = arith.constant 0 : index
    %c0_25 = arith.constant 0 : index
    %41 = vector.load %arg10[%c0_23, %c0_24, %c0_25] : memref<1x8x64xf32, #tpu.memory_space<vmem>>, vector<1x8x64xf32>
    %42 = vector.shape_cast %41 : vector<1x8x64xf32> to vector<8x64xf32>
    %43 = vector.shape_cast %40 : vector<8x64xf32> to vector<1x8x64xf32>
    tpu.vector_store %arg10[%c0_23, %c0_24, %c0_25], %43 {strides = array<i32>} : memref<1x8x64xf32, #tpu.memory_space<vmem>>, vector<1x8x64xf32>,
    %c0_26 = arith.constant 0 : index
    %c0_27 = arith.constant 0 : index
    %44 = vector.load %arg6[%c0_26, %c0_27] : memref<2x8xbf16, #tpu.memory_space<vmem>>, vector<2x8xbf16>
    %45 = arith.truncf %40 : vector<8x64xf32> to vector<8x64xbf16>
    %cst_28 = arith.constant dense<0.000000e+00> : vector<2x64xf32>
    %46 = tpu.matmul %44, %45, %cst_28 {dimension_numbers = #tpu.dot_dimension_numbers<[1], [0], [0], [1], [0, 0, 1, 1], [], []>} : vector<2x8xbf16>, vector<8x64xbf16>, vector<2x64xf32> -> vector<2x64xf32>
    %c0_29 = arith.constant 0 : index
    %c0_30 = arith.constant 0 : index
    %47 = vector.load %arg7[%c0_29, %c0_30] : memref<2x1xf32, #tpu.memory_space<vmem>>, vector<2x1xf32>
    %48 = vector.broadcast %47 : vector<2x1xf32> to vector<2x64xf32>
    %49 = arith.addf %46, %48 : vector<2x64xf32>
    %c0_31 = arith.constant 0 : index
    %c0_32 = arith.constant 0 : index
    %c0_33 = arith.constant 0 : index
    %50 = vector.load %arg11[%c0_31, %c0_32, %c0_33] : memref<1x2x64xf32, #tpu.memory_space<vmem>>, vector<1x2x64xf32>
    %51 = vector.shape_cast %50 : vector<1x2x64xf32> to vector<2x64xf32>
    %52 = vector.shape_cast %49 : vector<2x64xf32> to vector<1x2x64xf32>
    tpu.vector_store %arg11[%c0_31, %c0_32, %c0_33], %52 {strides = array<i32>} : memref<1x2x64xf32, #tpu.memory_space<vmem>>, vector<1x2x64xf32>,
    return
  }
  func.func @transform_0(%arg0: i32) -> (i32, i32) {
    %c0_i32 = arith.constant 0 : i32
    %c0_i32_0 = arith.constant 0 : i32
    %c0_i32_1 = arith.constant 0 : i32
    return %c0_i32, %c0_i32_0 : i32, i32
  }
  func.func @transform_1(%arg0: i32) -> (i32, i32) {
    %c0_i32 = arith.constant 0 : i32
    %c0_i32_0 = arith.constant 0 : i32
    %c0_i32_1 = arith.constant 0 : i32
    return %c0_i32, %c0_i32_0 : i32, i32
  }
  func.func @transform_2(%arg0: i32) -> (i32, i32) {
    %c0_i32 = arith.constant 0 : i32
    %c0_i32_0 = arith.constant 0 : i32
    %c0_i32_1 = arith.constant 0 : i32
    return %c0_i32, %c0_i32_0 : i32, i32
  }
  func.func @transform_3(%arg0: i32) -> (i32, i32) {
    %c0_i32 = arith.constant 0 : i32
    %c0_i32_0 = arith.constant 0 : i32
    %c0_i32_1 = arith.constant 0 : i32
    return %c0_i32, %c0_i32_0 : i32, i32
  }
  func.func @transform_4(%arg0: i32) -> (i32, i32) {
    %c0_i32 = arith.constant 0 : i32
    %c0_i32_0 = arith.constant 0 : i32
    %c0_i32_1 = arith.constant 0 : i32
    return %c0_i32, %c0_i32_0 : i32, i32
  }
  func.func @transform_5(%arg0: i32) -> (i32, i32) {
    %c0_i32 = arith.constant 0 : i32
    %c0_i32_0 = arith.constant 0 : i32
    %c0_i32_1 = arith.constant 0 : i32
    return %c0_i32, %c0_i32_0 : i32, i32
  }
  func.func @transform_6(%arg0: i32) -> (i32, i32) {
    %c0_i32 = arith.constant 0 : i32
    %c0_i32_0 = arith.constant 0 : i32
    %c0_i32_1 = arith.constant 0 : i32
    return %c0_i32, %c0_i32_0 : i32, i32
  }
  func.func @transform_7(%arg0: i32) -> (i32, i32, i32) {
    %c0_i32 = arith.constant 0 : i32
    %c0_i32_0 = arith.constant 0 : i32
    %c0_i32_1 = arith.constant 0 : i32
    return %arg0, %c0_i32, %c0_i32_0 : i32, i32, i32
  }
  func.func @transform_8(%arg0: i32) -> (i32, i32, i32) {
    %c0_i32 = arith.constant 0 : i32
    %c0_i32_0 = arith.constant 0 : i32
    %c0_i32_1 = arith.constant 0 : i32
    return %arg0, %c0_i32, %c0_i32_0 : i32, i32, i32
  }
  func.func @transform_9(%arg0: i32) -> (i32, i32, i32) {
    %c0_i32 = arith.constant 0 : i32
    %c0_i32_0 = arith.constant 0 : i32
    %c0_i32_1 = arith.constant 0 : i32
    return %arg0, %c0_i32, %c0_i32_0 : i32, i32, i32
  }
  func.func @transform_10(%arg0: i32) -> (i32, i32, i32) {
    %c0_i32 = arith.constant 0 : i32
    %c0_i32_0 = arith.constant 0 : i32
    %c0_i32_1 = arith.constant 0 : i32
    return %arg0, %c0_i32, %c0_i32_0 : i32, i32, i32
  }
}

</mosaic_0001>

<llo_original>
// kernel: skip_layer_forward.6
$region0: #{skip_layer_forward.6}
  #allocation0 [shape = 'u32[]', space=smem, size = 0x4, offset = 0x4, fixed_abs, tag = 'smem constant byte address 0x4 - core index']
  #allocation1 [shape = 'u32[144,128]{1,0:T(1,128)}', space=vmem, size = 0x12000, scoped, tag = 'internal scratch']
  %s0 = inlined_call_operand.vmem [shape: bf16[8,8], index: 0, kind: input, shape index: {}]
  %s1 = inlined_call_operand.vmem [shape: f32[8,1], index: 1, kind: input, shape index: {}]
  %s2 = inlined_call_operand.vmem [shape: f32[2,8,64], index: 2, kind: input, shape index: {}]
  %s3 = inlined_call_operand.vmem [shape: f32[2,8,64], index: 3, kind: output, shape index: {}]
  %s4 = sld [smem:[#allocation0]]
  $region45: #{skip_layer_forward.6} parent=0
    _
  %s6 = ssub.s32 1, %s4
  %s7 = scalar_select 0, %s6, %s4
  loop: start=0, step=1, limit=4
  $region2: #{skip_layer_forward.6} parent=0 // loop_pre_header
    _
  $region3: #{skip_layer_forward.6} parent=0 // loop_header
    %s9 = sphi 0, %s13
    %p10 = scmp.ge.s32.totalorder %s9, 4
    %s17 = sphi 0, %s17
    %s19 = sphi 0, %s17
    %s20 = sphi 0, %s19
    %s34 = sphi 0, %s20
    %s38 = sphi 0, %s38
    %s40 = sphi 0, %s38
    %s41 = sphi 0, %s40
    %s55 = sphi 0, %s41
    %s61 = sphi 0, %s63
    %s64 = sphi 0, %s61
    %s65 = sphi 0, %s64
    %s81 = sphi 0, %s65
    %s87 = sphi 0, %s89
    %s90 = sphi 0, %s87
    %s91 = sphi 0, %s90
    %s107 = sphi 0, %s91
  $region4: #{skip_layer_forward.6} parent=0 // loop_header_branch
    %12 = sbr.rel (%p10) target = $region8
  $region5: #{skip_layer_forward.6} parent=0 // loop_body
    %s14 = ssub.s32 %s9, 1
    %s15 = ssub.s32 %s9, 2
    %s16 = sadd.s32 %s9, 1
    %s18 = sadd.s32 %s17, 1
    %p21 = scmp.eq.s32.totalorder %s9, 1
    %p22 = scmp.ne.s32.totalorder %s17, %s19
    %p23 = scmp.eq.s32.totalorder %s9, 0
    %p24 = por %p22, %p23
    %p25 = scmp.ne.s32.totalorder %s17, %s19
    %p26 = scmp.eq.s32.totalorder %s14, 1
    %p27 = por %p25, %p26
    %p28 = scmp.ne.s32.totalorder %s19, %s20
    %p29 = scmp.eq.s32.totalorder %s14, 0
    %p30 = por %p28, %p29
    %p31 = scmp.ne.s32.totalorder %s19, %s20
    %p32 = scmp.eq.s32.totalorder %s15, 1
    %p33 = por %p31, %p32
    %p35 = scmp.ne.s32.totalorder %s20, %s34
    %p36 = scmp.eq.s32.totalorder %s15, 0
    %p37 = por %p35, %p36
    %s39 = sadd.s32 %s38, 1
    %p42 = scmp.eq.s32.totalorder %s9, 1
    %p43 = scmp.ne.s32.totalorder %s38, %s40
    %p44 = scmp.eq.s32.totalorder %s9, 0
    %p45 = por %p43, %p44
    %p46 = scmp.ne.s32.totalorder %s38, %s40
    %p47 = scmp.eq.s32.totalorder %s14, 1
    %p48 = por %p46, %p47
    %p49 = scmp.ne.s32.totalorder %s40, %s41
    %p50 = scmp.eq.s32.totalorder %s14, 0
    %p51 = por %p49, %p50
    %p52 = scmp.ne.s32.totalorder %s40, %s41
    %p53 = scmp.eq.s32.totalorder %s15, 1
    %p54 = por %p52, %p53
    %p56 = scmp.ne.s32.totalorder %s41, %s55
    %p57 = scmp.eq.s32.totalorder %s15, 0
    %p58 = por %p56, %p57
    %s59 = ssub.s32 %s9, %s16
    %p60 = scmp.eq.s32.totalorder %s59, 0
    %s62 = sadd.s32 %s61, 1
    %s63 = scalar_select %p60, %s61, %s62
    %p66 = pneg %p60
    %p67 = scmp.eq.s32.totalorder %s9, 1
    %p68 = por %p66, %p67
    %p69 = scmp.ne.s32.totalorder %s61, %s64
    %p70 = scmp.eq.s32.totalorder %s9, 0
    %p71 = por %p69, %p70
    %p72 = scmp.ne.s32.totalorder %s61, %s64
    %p73 = scmp.eq.s32.totalorder %s14, 1
    %p74 = por %p72, %p73
    %p75 = scmp.ne.s32.totalorder %s64, %s65
    %p76 = scmp.eq.s32.totalorder %s14, 0
    %p77 = por %p75, %p76
    %p78 = scmp.ne.s32.totalorder %s64, %s65
    %p79 = scmp.eq.s32.totalorder %s15, 1
    %p80 = por %p78, %p79
    %p82 = scmp.ne.s32.totalorder %s65, %s81
    %p83 = scmp.eq.s32.totalorder %s15, 0
    %p84 = por %p82, %p83
    %s85 = ssub.s32 %s9, %s16
    %p86 = scmp.eq.s32.totalorder %s85, 0
    %s88 = sadd.s32 %s87, 1
    %s89 = scalar_select %p86, %s87, %s88
    %p92 = pneg %p86
    %p93 = scmp.eq.s32.totalorder %s9, 1
    %p94 = por %p92, %p93
    %p95 = scmp.ne.s32.totalorder %s87, %s90
    %p96 = scmp.eq.s32.totalorder %s9, 0
    %p97 = por %p95, %p96
    %p98 = scmp.ne.s32.totalorder %s87, %s90
    %p99 = scmp.eq.s32.totalorder %s14, 1
    %p100 = por %p98, %p99
    %p101 = scmp.ne.s32.totalorder %s90, %s91
    %p102 = scmp.eq.s32.totalorder %s14, 0
    %p103 = por %p101, %p102
    %p104 = scmp.ne.s32.totalorder %s90, %s91
    %p105 = scmp.eq.s32.totalorder %s15, 1
    %p106 = por %p104, %p105
    %p108 = scmp.ne.s32.totalorder %s91, %s107
    %p109 = scmp.eq.s32.totalorder %s15, 0
    %p110 = por %p108, %p109
    %p111 = scmp.le.s32.totalorder 1, %s9
    %p112 = scmp.lt.s32.totalorder %s9, 3
    %p113 = pnand %p111, %p112
    %p114 = pneg %p113
    // Predicated region
    $region9: #{skip_layer_forward.6} parent=5 // pred_check
      _
    $region10: #{skip_layer_forward.6} parent=5 // pred_check_branch
      %116 = sbr.rel (%p113) target = $region12
    $region11: #{skip_layer_forward.6} parent=5 // pred_region
      %s117 = ssub.s32 %s9, 1
      // Predicated region
      $region13: #{skip_layer_forward.6} parent=11 // pred_check
        %p118 = pneg %p30
      $region14: #{skip_layer_forward.6} parent=11 // pred_check_branch
        %120 = sbr.rel (%p118) target = $region16
      $region15: #{skip_layer_forward.6} parent=11 // pred_region
        _
      $region16: #{skip_layer_forward.6} parent=11 // pred_fallthru
        _
      // Predicated region
      $region17: #{skip_layer_forward.6} parent=11 // pred_check
        %p121 = pneg %p51
      $region18: #{skip_layer_forward.6} parent=11 // pred_check_branch
        %123 = sbr.rel (%p121) target = $region20
      $region19: #{skip_layer_forward.6} parent=11 // pred_region
        _
      $region20: #{skip_layer_forward.6} parent=11 // pred_fallthru
        _
    $region12: #{skip_layer_forward.6} parent=5 // pred_fallthru
      _
    %p124 = scmp.lt.s32.totalorder %s9, 2
    // Predicated region
    $region21: #{skip_layer_forward.6} parent=5 // pred_check
      %p125 = pneg %p124
    $region22: #{skip_layer_forward.6} parent=5 // pred_check_branch
      %127 = sbr.rel (%p125) target = $region24
    $region23: #{skip_layer_forward.6} parent=5 // pred_region
      // Predicated region
      $region25: #{skip_layer_forward.6} parent=23 // pred_check
        %p128 = pneg %p71
      $region26: #{skip_layer_forward.6} parent=23 // pred_check_branch
        %130 = sbr.rel (%p128) target = $region28
      $region27: #{skip_layer_forward.6} parent=23 // pred_region
        %p131 = scmp.lt.s32.totalorder %s9, 1
        %s132 = scalar_select %p131, %s9, 1
        %s133 = smul.addr %s132, 8
        %s134 = scalar_lea.vmem %s2, %s133
      $region28: #{skip_layer_forward.6} parent=23 // pred_fallthru
        _
    $region24: #{skip_layer_forward.6} parent=5 // pred_fallthru
      _
    %p135 = scmp.le.s32.totalorder 1, %s9
    %p136 = scmp.lt.s32.totalorder %s9, 3
    %p137 = pnand %p135, %p136
    %p138 = pneg %p137
    // Predicated region
    $region29: #{skip_layer_forward.6} parent=5 // pred_check
      _
    $region30: #{skip_layer_forward.6} parent=5 // pred_check_branch
      %140 = sbr.rel (%p137) target = $region32
    $region31: #{skip_layer_forward.6} parent=5 // pred_region
      %s141 = ssub.s32 %s9, 1
      %p142 = pneg %p30
      %p143 = pneg %p27
      %p144 = pneg %p51
      %p145 = pneg %p48
      %p146 = scmp.lt.s32.totalorder %s14, 1
      %s147 = scalar_select %p146, %s14, 1
      %s148 = smul.addr %s147, 8
      %s149 = scalar_lea.vmem %s2, %s148
      %p150 = pneg %p77
      %p151 = pneg %p74
      %p152 = pneg %p103
      %p153 = pneg %p100
      %p154 = scmp.lt.s32.totalorder %s14, 1
      %s155 = scalar_select %p154, %s14, 1
      %s156 = smul.addr %s155, 8
      %s157 = scalar_lea.vmem %s3, %s156
      %p158 = scmp.lt.s32.totalorder %s14, 1
      %s159 = scalar_select %p158, %s14, 1
      %s160 = smul.addr %s159, 8
      %s161 = scalar_lea.vmem %s2, %s160
      %p162 = scmp.lt.s32.totalorder %s14, 1
      %s163 = scalar_select %p162, %s14, 1
      %s164 = smul.addr %s163, 8
      %s165 = scalar_lea.vmem %s3, %s164
      %v167 = vld [vmem:[%s161] sm:$0xff]
      %v168 = vld [vmem:[%s0] sm:$0xf]
      %v169 = vpack.c.bf16 %v167, %v167
      %v170 = vld [vmem:[%s1] sm:$0xff]
      %172 = vset.pattern.permute.xlu0 0
      %173 = vperm.xlu0 %172, %v170
      %v174 = vpop.permute.xlu0 %173
      %vm176 = vcmask 64512
      %v178 = vsel %vm176, %v168, 0
      %vm180 = vcmask 1043456
      %v182 = vsel %vm180, %v169, 0
      %184 = vmatprep.subr.bf16.mxu0 0
      %185 = vmatpush1.bf16.msra.mxu0 %v182
      %186 = vmatprep.subr.bf16.mxu0 0
      %187 = vmatpush1.bf16.msra.mxu0 0
      %188 = vmatprep.subr.bf16.mxu0 0
      %189 = vmatpush1.bf16.msra.mxu0 0
      %190 = vmatprep.subr.bf16.mxu0 0
      %191 = vmatpush1.bf16.msra.mxu0 0
      %192 = vmatprep.subr.bf16.mxu0 0
      %193 = vmatpush1.bf16.msra.mxu0 0
      %194 = vmatprep.subr.bf16.mxu0 0
      %195 = vmatpush1.bf16.msra.mxu0 0
      %196 = vmatprep.subr.bf16.mxu0 0
      %197 = vmatpush1.bf16.msra.mxu0 0
      %198 = vmatprep.subr.bf16.mxu0 0
      %199 = vmatpush1.bf16.msra.mxu0 0
      %200 = vmatprep.subr.bf16.mxu0 0
      %201 = vmatpush1.bf16.msra.mxu0 0
      %202 = vmatprep.subr.bf16.mxu0 0
      %203 = vmatpush1.bf16.msra.mxu0 0
      %204 = vmatprep.subr.bf16.mxu0 0
      %205 = vmatpush1.bf16.msra.mxu0 0
      %206 = vmatprep.subr.bf16.mxu0 0
      %207 = vmatpush1.bf16.msra.mxu0 0
      %208 = vmatprep.subr.bf16.mxu0 0
      %209 = vmatpush1.bf16.msra.mxu0 0
      %210 = vmatprep.subr.bf16.mxu0 0
      %211 = vmatpush1.bf16.msra.mxu0 0
      %212 = vmatprep.subr.bf16.mxu0 0
      %213 = vmatpush1.bf16.msra.mxu0 0
      %214 = vmatprep.subr.bf16.mxu0 0
      %215 = vmatpush1.bf16.msra.mxu0 0
      %216 = vmatprep.mubr.bf16.mxu0 0
      %217 = vmatmul.mubr.bf16.gmra.mrb[0].mxu0 %v178
      %v218 = vpop.f32.mrb[0].mxu0
      %v219 = vadd.f32 %v174, %v218
      %v220 = vpop.f32.mrb[0].mxu0
      %v221 = vpop.f32.mrb[0].mxu0
      %v222 = vpop.f32.mrb[0].mxu0
      %223 = vdwg.mxu0
      %v224 = vmax.f32 %v219, -30.0
      %v225 = vmin.f32 %v224, 30.0
      %v226 = vsub.f32 0.0, %v225
      %v227 = vmul.f32 %v226, 1.442695
      %v228 = vpow.pop %v227
      %v229 = vadd.f32 %v228, 1.0
      %v230 = vrcp.pop %v229
      %v231 = vadd.f32 %v167, %v230
      %vm232 = vcmask 523264
      %233 = vst.msk [vmem:[%s165] sm:$0xff] %vm232, %v231
      %p234 = scmp.lt.s32.totalorder %s14, 1
      %s235 = scalar_select %p234, %s14, 1
      %s236 = smul.addr %s235, 8
      %s237 = scalar_lea.vmem %s3, %s236
      // Predicated region
      $region33: #{skip_layer_forward.6} parent=31 // pred_check
        %p238 = pneg %p100
      $region34: #{skip_layer_forward.6} parent=31 // pred_check_branch
        %240 = sbr.rel (%p238) target = $region36
      $region35: #{skip_layer_forward.6} parent=31 // pred_region
        _
      $region36: #{skip_layer_forward.6} parent=31 // pred_fallthru
        _
    $region32: #{skip_layer_forward.6} parent=5 // pred_fallthru
      _
    %p241 = scmp.le.s32.totalorder 2, %s9
    // Predicated region
    $region37: #{skip_layer_forward.6} parent=5 // pred_check
      %p242 = pneg %p241
    $region38: #{skip_layer_forward.6} parent=5 // pred_check_branch
      %244 = sbr.rel (%p242) target = $region40
    $region39: #{skip_layer_forward.6} parent=5 // pred_region
      %s245 = ssub.s32 %s9, 2
      // Predicated region
      $region41: #{skip_layer_forward.6} parent=39 // pred_check
        %p246 = pneg %p106
      $region42: #{skip_layer_forward.6} parent=39 // pred_check_branch
        %248 = sbr.rel (%p246) target = $region44
      $region43: #{skip_layer_forward.6} parent=39 // pred_region
        %p249 = scmp.lt.s32.totalorder %s15, 1
        %s250 = scalar_select %p249, %s15, 1
        %s251 = smul.addr %s250, 8
        %s252 = scalar_lea.vmem %s3, %s251
      $region44: #{skip_layer_forward.6} parent=39 // pred_fallthru
        _
    $region40: #{skip_layer_forward.6} parent=5 // pred_fallthru
      _
  $region6: #{skip_layer_forward.6} parent=0 // loop_footer
    %s13 = sadd.s32 1, %s9
  $region7: #{skip_layer_forward.6} parent=0 // loop_footer_branch
    %8 = sbr.rel target = $region3
  $region8: #{skip_layer_forward.6} parent=0 // loop_exit
    _

// kernel: skip_layer_forward.5
$region0: #{skip_layer_forward.5}
  #allocation0 [shape = 'u32[]', space=smem, size = 0x4, offset = 0x4, fixed_abs, tag = 'smem constant byte address 0x4 - core index']
  #allocation1 [shape = 'u32[144,128]{1,0:T(1,128)}', space=vmem, size = 0x12000, scoped, tag = 'internal scratch']
  %s0 = inlined_call_operand.vmem [shape: bf16[8,36], index: 0, kind: input, shape index: {}]
  %s1 = inlined_call_operand.vmem [shape: f32[8,1], index: 1, kind: input, shape index: {}]
  %s2 = inlined_call_operand.vmem [shape: f32[8,1], index: 2, kind: input, shape index: {}]
  %s3 = inlined_call_operand.vmem [shape: f32[8,1], index: 3, kind: input, shape index: {}]
  %s4 = inlined_call_operand.vmem [shape: bf16[2,36,64], index: 4, kind: input, shape index: {}]
  %s5 = inlined_call_operand.vmem [shape: f32[2,8,64], index: 5, kind: output, shape index: {}]
  %s6 = sld [smem:[#allocation0]]
  $region53: #{skip_layer_forward.5} parent=0
    _
  %s8 = ssub.s32 1, %s6
  %s9 = scalar_select 0, %s8, %s6
  loop: start=0, step=1, limit=4
  $region2: #{skip_layer_forward.5} parent=0 // loop_pre_header
    _
  $region3: #{skip_layer_forward.5} parent=0 // loop_header
    %s11 = sphi 0, %s15
    %p12 = scmp.ge.s32.totalorder %s11, 4
    %s19 = sphi 0, %s19
    %s21 = sphi 0, %s19
    %s22 = sphi 0, %s21
    %s36 = sphi 0, %s22
    %s40 = sphi 0, %s40
    %s42 = sphi 0, %s40
    %s43 = sphi 0, %s42
    %s57 = sphi 0, %s43
    %s61 = sphi 0, %s61
    %s63 = sphi 0, %s61
    %s64 = sphi 0, %s63
    %s78 = sphi 0, %s64
    %s82 = sphi 0, %s82
    %s84 = sphi 0, %s82
    %s85 = sphi 0, %s84
    %s99 = sphi 0, %s85
    %s105 = sphi 0, %s107
    %s108 = sphi 0, %s105
    %s109 = sphi 0, %s108
    %s125 = sphi 0, %s109
    %s131 = sphi 0, %s133
    %s134 = sphi 0, %s131
    %s135 = sphi 0, %s134
    %s151 = sphi 0, %s135
  $region4: #{skip_layer_forward.5} parent=0 // loop_header_branch
    %14 = sbr.rel (%p12) target = $region8
  $region5: #{skip_layer_forward.5} parent=0 // loop_body
    %s16 = ssub.s32 %s11, 1
    %s17 = ssub.s32 %s11, 2
    %s18 = sadd.s32 %s11, 1
    %s20 = sadd.s32 %s19, 1
    %p23 = scmp.eq.s32.totalorder %s11, 1
    %p24 = scmp.ne.s32.totalorder %s19, %s21
    %p25 = scmp.eq.s32.totalorder %s11, 0
    %p26 = por %p24, %p25
    %p27 = scmp.ne.s32.totalorder %s19, %s21
    %p28 = scmp.eq.s32.totalorder %s16, 1
    %p29 = por %p27, %p28
    %p30 = scmp.ne.s32.totalorder %s21, %s22
    %p31 = scmp.eq.s32.totalorder %s16, 0
    %p32 = por %p30, %p31
    %p33 = scmp.ne.s32.totalorder %s21, %s22
    %p34 = scmp.eq.s32.totalorder %s17, 1
    %p35 = por %p33, %p34
    %p37 = scmp.ne.s32.totalorder %s22, %s36
    %p38 = scmp.eq.s32.totalorder %s17, 0
    %p39 = por %p37, %p38
    %s41 = sadd.s32 %s40, 1
    %p44 = scmp.eq.s32.totalorder %s11, 1
    %p45 = scmp.ne.s32.totalorder %s40, %s42
    %p46 = scmp.eq.s32.totalorder %s11, 0
    %p47 = por %p45, %p46
    %p48 = scmp.ne.s32.totalorder %s40, %s42
    %p49 = scmp.eq.s32.totalorder %s16, 1
    %p50 = por %p48, %p49
    %p51 = scmp.ne.s32.totalorder %s42, %s43
    %p52 = scmp.eq.s32.totalorder %s16, 0
    %p53 = por %p51, %p52
    %p54 = scmp.ne.s32.totalorder %s42, %s43
    %p55 = scmp.eq.s32.totalorder %s17, 1
    %p56 = por %p54, %p55
    %p58 = scmp.ne.s32.totalorder %s43, %s57
    %p59 = scmp.eq.s32.totalorder %s17, 0
    %p60 = por %p58, %p59
    %s62 = sadd.s32 %s61, 1
    %p65 = scmp.eq.s32.totalorder %s11, 1
    %p66 = scmp.ne.s32.totalorder %s61, %s63
    %p67 = scmp.eq.s32.totalorder %s11, 0
    %p68 = por %p66, %p67
    %p69 = scmp.ne.s32.totalorder %s61, %s63
    %p70 = scmp.eq.s32.totalorder %s16, 1
    %p71 = por %p69, %p70
    %p72 = scmp.ne.s32.totalorder %s63, %s64
    %p73 = scmp.eq.s32.totalorder %s16, 0
    %p74 = por %p72, %p73
    %p75 = scmp.ne.s32.totalorder %s63, %s64
    %p76 = scmp.eq.s32.totalorder %s17, 1
    %p77 = por %p75, %p76
    %p79 = scmp.ne.s32.totalorder %s64, %s78
    %p80 = scmp.eq.s32.totalorder %s17, 0
    %p81 = por %p79, %p80
    %s83 = sadd.s32 %s82, 1
    %p86 = scmp.eq.s32.totalorder %s11, 1
    %p87 = scmp.ne.s32.totalorder %s82, %s84
    %p88 = scmp.eq.s32.totalorder %s11, 0
    %p89 = por %p87, %p88
    %p90 = scmp.ne.s32.totalorder %s82, %s84
    %p91 = scmp.eq.s32.totalorder %s16, 1
    %p92 = por %p90, %p91
    %p93 = scmp.ne.s32.totalorder %s84, %s85
    %p94 = scmp.eq.s32.totalorder %s16, 0
    %p95 = por %p93, %p94
    %p96 = scmp.ne.s32.totalorder %s84, %s85
    %p97 = scmp.eq.s32.totalorder %s17, 1
    %p98 = por %p96, %p97
    %p100 = scmp.ne.s32.totalorder %s85, %s99
    %p101 = scmp.eq.s32.totalorder %s17, 0
    %p102 = por %p100, %p101
    %s103 = ssub.s32 %s11, %s18
    %p104 = scmp.eq.s32.totalorder %s103, 0
    %s106 = sadd.s32 %s105, 1
    %s107 = scalar_select %p104, %s105, %s106
    %p110 = pneg %p104
    %p111 = scmp.eq.s32.totalorder %s11, 1
    %p112 = por %p110, %p111
    %p113 = scmp.ne.s32.totalorder %s105, %s108
    %p114 = scmp.eq.s32.totalorder %s11, 0
    %p115 = por %p113, %p114
    %p116 = scmp.ne.s32.totalorder %s105, %s108
    %p117 = scmp.eq.s32.totalorder %s16, 1
    %p118 = por %p116, %p117
    %p119 = scmp.ne.s32.totalorder %s108, %s109
    %p120 = scmp.eq.s32.totalorder %s16, 0
    %p121 = por %p119, %p120
    %p122 = scmp.ne.s32.totalorder %s108, %s109
    %p123 = scmp.eq.s32.totalorder %s17, 1
    %p124 = por %p122, %p123
    %p126 = scmp.ne.s32.totalorder %s109, %s125
    %p127 = scmp.eq.s32.totalorder %s17, 0
    %p128 = por %p126, %p127
    %s129 = ssub.s32 %s11, %s18
    %p130 = scmp.eq.s32.totalorder %s129, 0
    %s132 = sadd.s32 %s131, 1
    %s133 = scalar_select %p130, %s131, %s132
    %p136 = pneg %p130
    %p137 = scmp.eq.s32.totalorder %s11, 1
    %p138 = por %p136, %p137
    %p139 = scmp.ne.s32.totalorder %s131, %s134
    %p140 = scmp.eq.s32.totalorder %s11, 0
    %p141 = por %p139, %p140
    %p142 = scmp.ne.s32.totalorder %s131, %s134
    %p143 = scmp.eq.s32.totalorder %s16, 1
    %p144 = por %p142, %p143
    %p145 = scmp.ne.s32.totalorder %s134, %s135
    %p146 = scmp.eq.s32.totalorder %s16, 0
    %p147 = por %p145, %p146
    %p148 = scmp.ne.s32.totalorder %s134, %s135
    %p149 = scmp.eq.s32.totalorder %s17, 1
    %p150 = por %p148, %p149
    %p152 = scmp.ne.s32.totalorder %s135, %s151
    %p153 = scmp.eq.s32.totalorder %s17, 0
    %p154 = por %p152, %p153
    %p155 = scmp.le.s32.totalorder 1, %s11
    %p156 = scmp.lt.s32.totalorder %s11, 3
    %p157 = pnand %p155, %p156
    %p158 = pneg %p157
    // Predicated region
    $region9: #{skip_layer_forward.5} parent=5 // pred_check
      _
    $region10: #{skip_layer_forward.5} parent=5 // pred_check_branch
      %160 = sbr.rel (%p157) target = $region12
    $region11: #{skip_layer_forward.5} parent=5 // pred_region
      %s161 = ssub.s32 %s11, 1
      // Predicated region
      $region13: #{skip_layer_forward.5} parent=11 // pred_check
        %p162 = pneg %p32
      $region14: #{skip_layer_forward.5} parent=11 // pred_check_branch
        %164 = sbr.rel (%p162) target = $region16
      $region15: #{skip_layer_forward.5} parent=11 // pred_region
        _
      $region16: #{skip_layer_forward.5} parent=11 // pred_fallthru
        _
      // Predicated region
      $region17: #{skip_layer_forward.5} parent=11 // pred_check
        %p165 = pneg %p53
      $region18: #{skip_layer_forward.5} parent=11 // pred_check_branch
        %167 = sbr.rel (%p165) target = $region20
      $region19: #{skip_layer_forward.5} parent=11 // pred_region
        _
      $region20: #{skip_layer_forward.5} parent=11 // pred_fallthru
        _
      // Predicated region
      $region21: #{skip_layer_forward.5} parent=11 // pred_check
        %p168 = pneg %p74
      $region22: #{skip_layer_forward.5} parent=11 // pred_check_branch
        %170 = sbr.rel (%p168) target = $region24
      $region23: #{skip_layer_forward.5} parent=11 // pred_region
        _
      $region24: #{skip_layer_forward.5} parent=11 // pred_fallthru
        _
      // Predicated region
      $region25: #{skip_layer_forward.5} parent=11 // pred_check
        %p171 = pneg %p95
      $region26: #{skip_layer_forward.5} parent=11 // pred_check_branch
        %173 = sbr.rel (%p171) target = $region28
      $region27: #{skip_layer_forward.5} parent=11 // pred_region
        _
      $region28: #{skip_layer_forward.5} parent=11 // pred_fallthru
        _
    $region12: #{skip_layer_forward.5} parent=5 // pred_fallthru
      _
    %p174 = scmp.lt.s32.totalorder %s11, 2
    // Predicated region
    $region29: #{skip_layer_forward.5} parent=5 // pred_check
      %p175 = pneg %p174
    $region30: #{skip_layer_forward.5} parent=5 // pred_check_branch
      %177 = sbr.rel (%p175) target = $region32
    $region31: #{skip_layer_forward.5} parent=5 // pred_region
      // Predicated region
      $region33: #{skip_layer_forward.5} parent=31 // pred_check
        %p178 = pneg %p115
      $region34: #{skip_layer_forward.5} parent=31 // pred_check_branch
        %180 = sbr.rel (%p178) target = $region36
      $region35: #{skip_layer_forward.5} parent=31 // pred_region
        %p181 = scmp.lt.s32.totalorder %s11, 1
        %s182 = scalar_select %p181, %s11, 1
        %s183 = smul.addr %s182, 5
        %s184 = smul.addr %s183, 4
        %s185 = scalar_lea.vmem %s4, %s184
      $region36: #{skip_layer_forward.5} parent=31 // pred_fallthru
        _
    $region32: #{skip_layer_forward.5} parent=5 // pred_fallthru
      _
    %p186 = scmp.le.s32.totalorder 1, %s11
    %p187 = scmp.lt.s32.totalorder %s11, 3
    %p188 = pnand %p186, %p187
    %p189 = pneg %p188
    // Predicated region
    $region37: #{skip_layer_forward.5} parent=5 // pred_check
      _
    $region38: #{skip_layer_forward.5} parent=5 // pred_check_branch
      %191 = sbr.rel (%p188) target = $region40
    $region39: #{skip_layer_forward.5} parent=5 // pred_region
      %s192 = ssub.s32 %s11, 1
      %p193 = pneg %p32
      %p194 = pneg %p29
      %p195 = pneg %p53
      %p196 = pneg %p50
      %p197 = pneg %p74
      %p198 = pneg %p71
      %p199 = pneg %p95
      %p200 = pneg %p92
      %p201 = scmp.lt.s32.totalorder %s16, 1
      %s202 = scalar_select %p201, %s16, 1
      %s203 = smul.addr %s202, 5
      %s204 = smul.addr %s203, 4
      %s205 = scalar_lea.vmem %s4, %s204
      %p206 = pneg %p121
      %p207 = pneg %p118
      %p208 = pneg %p147
      %p209 = pneg %p144
      %p210 = scmp.lt.s32.totalorder %s16, 1
      %s211 = scalar_select %p210, %s16, 1
      %s212 = smul.addr %s211, 8
      %s213 = scalar_lea.vmem %s5, %s212
      %p214 = scmp.lt.s32.totalorder %s16, 1
      %s215 = scalar_select %p214, %s16, 1
      %s216 = smul.addr %s215, 5
      %s217 = smul.addr %s216, 4
      %s218 = scalar_lea.vmem %s4, %s217
      %p219 = scmp.lt.s32.totalorder %s16, 1
      %s220 = scalar_select %p219, %s16, 1
      %s221 = smul.addr %s220, 8
      %s222 = scalar_lea.vmem %s5, %s221
      %v224 = vld [vmem:[%s0] sm:$0xf]
      %v225 = vld [vmem:[%s218] sm:$0xf]
      %v226 = vld [vmem:[%s218 + $0x4] sm:$0xf]
      %v227 = vld [vmem:[%s218 + $0x8] sm:$0xf]
      %v228 = vld [vmem:[%s218 + $0xc] sm:$0xf]
      %v229 = vld [vmem:[%s218 + $0x10] sm:$0x3]
      %v230 = vld [vmem:[%s1] sm:$0xff]
      %232 = vset.pattern.permute.xlu0 0
      %233 = vperm.xlu0 %232, %v230
      %v234 = vpop.permute.xlu0 %233
      %v241 = vunpack.c.l.b16 %v225
      %v242 = vunpack.c.l.b16 %v226
      %v243 = vunpack.c.l.b16 %v227
      %v244 = vunpack.c.l.b16 %v228
      %v245 = vunpack.c.l.b16 %v229
      %v246 = vpack.c.b16 %v242, %v241
      %v247 = vpack.c.b16 %v244, %v243
      %v248 = vpack.c.b16 %v245, %v245
      %vm251 = vcmask 293888
      %v253 = vsel %vm251, %v224, 0
      %vm255 = vcmask 1041408
      %v257 = vsel %vm255, %v248, 0
      %259 = vmatprep.subr.bf16.mxu0 0
      %260 = vmatpush1.bf16.msra.mxu0 %v246
      %261 = vmatprep.subr.bf16.mxu0 0
      %262 = vmatpush1.bf16.msra.mxu0 %v247
      %263 = vmatprep.subr.bf16.mxu0 0
      %264 = vmatpush1.bf16.msra.mxu0 %v257
      %265 = vmatprep.subr.bf16.mxu0 0
      %266 = vmatpush1.bf16.msra.mxu0 0
      %267 = vmatprep.subr.bf16.mxu0 0
      %268 = vmatpush1.bf16.msra.mxu0 0
      %269 = vmatprep.subr.bf16.mxu0 0
      %270 = vmatpush1.bf16.msra.mxu0 0
      %271 = vmatprep.subr.bf16.mxu0 0
      %272 = vmatpush1.bf16.msra.mxu0 0
      %273 = vmatprep.subr.bf16.mxu0 0
      %274 = vmatpush1.bf16.msra.mxu0 0
      %275 = vmatprep.subr.bf16.mxu0 0
      %276 = vmatpush1.bf16.msra.mxu0 0
      %277 = vmatprep.subr.bf16.mxu0 0
      %278 = vmatpush1.bf16.msra.mxu0 0
      %279 = vmatprep.subr.bf16.mxu0 0
      %280 = vmatpush1.bf16.msra.mxu0 0
      %281 = vmatprep.subr.bf16.mxu0 0
      %282 = vmatpush1.bf16.msra.mxu0 0
      %283 = vmatprep.subr.bf16.mxu0 0
      %284 = vmatpush1.bf16.msra.mxu0 0
      %285 = vmatprep.subr.bf16.mxu0 0
      %286 = vmatpush1.bf16.msra.mxu0 0
      %287 = vmatprep.subr.bf16.mxu0 0
      %288 = vmatpush1.bf16.msra.mxu0 0
      %289 = vmatprep.subr.bf16.mxu0 0
      %290 = vmatpush1.bf16.msra.mxu0 0
      %291 = vmatprep.mubr.bf16.mxu0 0
      %292 = vmatmul.mubr.bf16.gmra.mrb[0].mxu0 %v253
      %v293 = vpop.f32.mrb[0].mxu0
      %v294 = vadd.f32 %v234, %v293
      %v295 = vpop.f32.mrb[0].mxu0
      %v296 = vpop.f32.mrb[0].mxu0
      %v297 = vpop.f32.mrb[0].mxu0
      %298 = vdwg.mxu0
      %vm299 = vcmask 523264
      %v300 = vsel %vm299, %v294, 0.0
      %301 = vadd.xlane.f32.xlu0 %v300
      %v302 = vpop.xlane.xlu0 %301
      %v303 = vrcp.pop 64.0
      %v304 = vmul.f32 %v302, %v303
      %v305 = vsub.f32 %v294, %v304
      %v306 = vmul.f32 %v305, %v305
      %v307 = vsel %vm299, %v306, 0.0
      %308 = vadd.xlane.f32.xlu0 %v307
      %v309 = vpop.xlane.xlu0 %308
      %v310 = vmul.f32 %v309, %v303
      %v311 = vadd.f32 %v310, 1e-05
      %v312 = vrsqrt.pop %v311
      %v313 = vmul.f32 %v305, %v312
      %v314 = vld [vmem:[%s2] sm:$0xff]
      %316 = vset.pattern.permute.xlu0 0
      %317 = vperm.xlu0 %316, %v314
      %v318 = vpop.permute.xlu0 %317
      %v320 = vmul.f32 %v313, %v318
      %v321 = vld [vmem:[%s3] sm:$0xff]
      %323 = vset.pattern.permute.xlu0 0
      %324 = vperm.xlu0 %323, %v321
      %v325 = vpop.permute.xlu0 %324
      %v327 = vadd.f32 %v320, %v325
      %vm328 = vcmp.ge.f32.partialorder %v327, 0.0
      %v329 = vmul.f32 %v327, 0.01
      %v330 = vsel %vm328, %v327, %v329
      %331 = vst.msk [vmem:[%s222] sm:$0xff] %vm299, %v330
      %p332 = scmp.lt.s32.totalorder %s16, 1
      %s333 = scalar_select %p332, %s16, 1
      %s334 = smul.addr %s333, 8
      %s335 = scalar_lea.vmem %s5, %s334
      // Predicated region
      $region41: #{skip_layer_forward.5} parent=39 // pred_check
        %p336 = pneg %p144
      $region42: #{skip_layer_forward.5} parent=39 // pred_check_branch
        %338 = sbr.rel (%p336) target = $region44
      $region43: #{skip_layer_forward.5} parent=39 // pred_region
        _
      $region44: #{skip_layer_forward.5} parent=39 // pred_fallthru
        _
    $region40: #{skip_layer_forward.5} parent=5 // pred_fallthru
      _
    %p339 = scmp.le.s32.totalorder 2, %s11
    // Predicated region
    $region45: #{skip_layer_forward.5} parent=5 // pred_check
      %p340 = pneg %p339
    $region46: #{skip_layer_forward.5} parent=5 // pred_check_branch
      %342 = sbr.rel (%p340) target = $region48
    $region47: #{skip_layer_forward.5} parent=5 // pred_region
      %s343 = ssub.s32 %s11, 2
      // Predicated region
      $region49: #{skip_layer_forward.5} parent=47 // pred_check
        %p344 = pneg %p150
      $region50: #{skip_layer_forward.5} parent=47 // pred_check_branch
        %346 = sbr.rel (%p344) target = $region52
      $region51: #{skip_layer_forward.5} parent=47 // pred_region
        %p347 = scmp.lt.s32.totalorder %s17, 1
        %s348 = scalar_select %p347, %s17, 1
        %s349 = smul.addr %s348, 8
        %s350 = scalar_lea.vmem %s5, %s349
      $region52: #{skip_layer_forward.5} parent=47 // pred_fallthru
        _
    $region48: #{skip_layer_forward.5} parent=5 // pred_fallthru
      _
  $region6: #{skip_layer_forward.5} parent=0 // loop_footer
    %s15 = sadd.s32 1, %s11
  $region7: #{skip_layer_forward.5} parent=0 // loop_footer_branch
    %10 = sbr.rel target = $region3
  $region8: #{skip_layer_forward.5} parent=0 // loop_exit
    _

// kernel: tile.8
$region0: #{tile.8}
  #allocation0 [shape = 's32[1]{0}', space=sflag, size = 0x4, scoped, tag = 'scoped memory for tile.8']
  %s0 = inlined_call_operand.vmem [shape: f32[8], index: 0, kind: input, shape index: {}]
  %s1 = inlined_call_operand.vmem [shape: f32[4,8], index: 1, kind: output, shape index: {}]
  // Predicated region
  $region2: #{tile.8} parent=0 // pred_check
    _
  $region3: #{tile.8} parent=0 // pred_check_branch
    %3 = sbr.rel (0) target = $region5
  $region4: #{tile.8} parent=0 // pred_region
    _
  $region5: #{tile.8} parent=0 // pred_fallthru
    _
  %v4 = vld [vmem:[%s0] ss:$0 sm:$0xff]
  %5 = vst [vmem:[%s1] sm:$0xf] %v4

// kernel: tile.0
$region0: #{tile.0}
  %s0 = inlined_call_operand.vmem [shape: f32[4,8], index: 0, kind: input, shape index: {}]
  %s1 = inlined_call_operand.vmem [shape: f32[32,1], index: 1, kind: output, shape index: {}]
  $region1: #{tile.0} parent=0
    #allocation0 [shape = 'u8[4096]{0}', space=vmem, size = 0x1000, scoped, tag = 'scoped mem for input reshape']
    %s3 = sshllo.u32 0, 4
    %v4 = vld [vmem:[%s0] sm:%s3]
    %5 = vst [vmem:[#allocation0] sm:%s3] %v4
    %v6 = vld [vmem:[#allocation0] sm:$0xf]
    %vm7 = vcmask 7168
    %8 = vst.msk [vmem:[%s1] ss:$8 sm:$0xf] %vm7, %v6
    %v9 = vld [vmem:[#allocation0] sm:$0xf]
    %10 = vrot.lane.b32.xlu0 %v9, 127
    %v11 = vpop.permute.xlu0 %10
    %vm12 = vcmask 7168
    %s13 = scalar_lea.vmem %s1, 1
    %14 = vst.msk [vmem:[%s13] ss:$8 sm:$0xf] %vm12, %v11
    %v15 = vld [vmem:[#allocation0] sm:$0xf]
    %16 = vrot.lane.b32.xlu0 %v15, 126
    %v17 = vpop.permute.xlu0 %16
    %vm18 = vcmask 7168
    %s19 = scalar_lea.vmem %s1, 2
    %20 = vst.msk [vmem:[%s19] ss:$8 sm:$0xf] %vm18, %v17
    %v21 = vld [vmem:[#allocation0] sm:$0xf]
    %22 = vrot.lane.b32.xlu0 %v21, 125
    %v23 = vpop.permute.xlu0 %22
    %vm24 = vcmask 7168
    %s25 = scalar_lea.vmem %s1, 3
    %26 = vst.msk [vmem:[%s25] ss:$8 sm:$0xf] %vm24, %v23
    %v27 = vld [vmem:[#allocation0] sm:$0xf]
    %28 = vrot.lane.b32.xlu0 %v27, 124
    %v29 = vpop.permute.xlu0 %28
    %vm30 = vcmask 7168
    %s31 = scalar_lea.vmem %s1, 4
    %32 = vst.msk [vmem:[%s31] ss:$8 sm:$0xf] %vm30, %v29
    %v33 = vld [vmem:[#allocation0] sm:$0xf]
    %34 = vrot.lane.b32.xlu0 %v33, 123
    %v35 = vpop.permute.xlu0 %34
    %vm36 = vcmask 7168
    %s37 = scalar_lea.vmem %s1, 5
    %38 = vst.msk [vmem:[%s37] ss:$8 sm:$0xf] %vm36, %v35
    %v39 = vld [vmem:[#allocation0] sm:$0xf]
    %40 = vrot.lane.b32.xlu0 %v39, 122
    %v41 = vpop.permute.xlu0 %40
    %vm42 = vcmask 7168
    %s43 = scalar_lea.vmem %s1, 6
    %44 = vst.msk [vmem:[%s43] ss:$8 sm:$0xf] %vm42, %v41
    %v45 = vld [vmem:[#allocation0] sm:$0xf]
    %46 = vrot.lane.b32.xlu0 %v45, 121
    %v47 = vpop.permute.xlu0 %46
    %vm48 = vcmask 7168
    %s49 = scalar_lea.vmem %s1, 7
    %50 = vst.msk [vmem:[%s49] ss:$8 sm:$0xf] %vm48, %v47

// kernel: skip_layer_forward.7
$region0: #{skip_layer_forward.7}
  #allocation0 [shape = 'u32[]', space=smem, size = 0x4, offset = 0x4, fixed_abs, tag = 'smem constant byte address 0x4 - core index']
  #allocation1 [shape = 'u32[144,128]{1,0:T(1,128)}', space=vmem, size = 0x12000, scoped, tag = 'internal scratch']
  %s0 = inlined_call_operand.vmem [shape: bf16[16,72], index: 0, kind: input, shape index: {}]
  %s1 = inlined_call_operand.vmem [shape: f32[16,1], index: 1, kind: input, shape index: {}]
  %s2 = inlined_call_operand.vmem [shape: f32[16,1], index: 2, kind: input, shape index: {}]
  %s3 = inlined_call_operand.vmem [shape: f32[16,1], index: 3, kind: input, shape index: {}]
  %s4 = inlined_call_operand.vmem [shape: bf16[2,72,16], index: 4, kind: input, shape index: {}]
  %s5 = inlined_call_operand.vmem [shape: f32[2,16,16], index: 5, kind: output, shape index: {}]
  %s6 = sld [smem:[#allocation0]]
  $region53: #{skip_layer_forward.7} parent=0
    _
  %s8 = ssub.s32 1, %s6
  %s9 = scalar_select 0, %s8, %s6
  loop: start=0, step=1, limit=4
  $region2: #{skip_layer_forward.7} parent=0 // loop_pre_header
    _
  $region3: #{skip_layer_forward.7} parent=0 // loop_header
    %s11 = sphi 0, %s15
    %p12 = scmp.ge.s32.totalorder %s11, 4
    %s19 = sphi 0, %s19
    %s21 = sphi 0, %s19
    %s22 = sphi 0, %s21
    %s36 = sphi 0, %s22
    %s40 = sphi 0, %s40
    %s42 = sphi 0, %s40
    %s43 = sphi 0, %s42
    %s57 = sphi 0, %s43
    %s61 = sphi 0, %s61
    %s63 = sphi 0, %s61
    %s64 = sphi 0, %s63
    %s78 = sphi 0, %s64
    %s82 = sphi 0, %s82
    %s84 = sphi 0, %s82
    %s85 = sphi 0, %s84
    %s99 = sphi 0, %s85
    %s105 = sphi 0, %s107
    %s108 = sphi 0, %s105
    %s109 = sphi 0, %s108
    %s125 = sphi 0, %s109
    %s131 = sphi 0, %s133
    %s134 = sphi 0, %s131
    %s135 = sphi 0, %s134
    %s151 = sphi 0, %s135
  $region4: #{skip_layer_forward.7} parent=0 // loop_header_branch
    %14 = sbr.rel (%p12) target = $region8
  $region5: #{skip_layer_forward.7} parent=0 // loop_body
    %s16 = ssub.s32 %s11, 1
    %s17 = ssub.s32 %s11, 2
    %s18 = sadd.s32 %s11, 1
    %s20 = sadd.s32 %s19, 1
    %p23 = scmp.eq.s32.totalorder %s11, 1
    %p24 = scmp.ne.s32.totalorder %s19, %s21
    %p25 = scmp.eq.s32.totalorder %s11, 0
    %p26 = por %p24, %p25
    %p27 = scmp.ne.s32.totalorder %s19, %s21
    %p28 = scmp.eq.s32.totalorder %s16, 1
    %p29 = por %p27, %p28
    %p30 = scmp.ne.s32.totalorder %s21, %s22
    %p31 = scmp.eq.s32.totalorder %s16, 0
    %p32 = por %p30, %p31
    %p33 = scmp.ne.s32.totalorder %s21, %s22
    %p34 = scmp.eq.s32.totalorder %s17, 1
    %p35 = por %p33, %p34
    %p37 = scmp.ne.s32.totalorder %s22, %s36
    %p38 = scmp.eq.s32.totalorder %s17, 0
    %p39 = por %p37, %p38
    %s41 = sadd.s32 %s40, 1
    %p44 = scmp.eq.s32.totalorder %s11, 1
    %p45 = scmp.ne.s32.totalorder %s40, %s42
    %p46 = scmp.eq.s32.totalorder %s11, 0
    %p47 = por %p45, %p46
    %p48 = scmp.ne.s32.totalorder %s40, %s42
    %p49 = scmp.eq.s32.totalorder %s16, 1
    %p50 = por %p48, %p49
    %p51 = scmp.ne.s32.totalorder %s42, %s43
    %p52 = scmp.eq.s32.totalorder %s16, 0
    %p53 = por %p51, %p52
    %p54 = scmp.ne.s32.totalorder %s42, %s43
    %p55 = scmp.eq.s32.totalorder %s17, 1
    %p56 = por %p54, %p55
    %p58 = scmp.ne.s32.totalorder %s43, %s57
    %p59 = scmp.eq.s32.totalorder %s17, 0
    %p60 = por %p58, %p59
    %s62 = sadd.s32 %s61, 1
    %p65 = scmp.eq.s32.totalorder %s11, 1
    %p66 = scmp.ne.s32.totalorder %s61, %s63
    %p67 = scmp.eq.s32.totalorder %s11, 0
    %p68 = por %p66, %p67
    %p69 = scmp.ne.s32.totalorder %s61, %s63
    %p70 = scmp.eq.s32.totalorder %s16, 1
    %p71 = por %p69, %p70
    %p72 = scmp.ne.s32.totalorder %s63, %s64
    %p73 = scmp.eq.s32.totalorder %s16, 0
    %p74 = por %p72, %p73
    %p75 = scmp.ne.s32.totalorder %s63, %s64
    %p76 = scmp.eq.s32.totalorder %s17, 1
    %p77 = por %p75, %p76
    %p79 = scmp.ne.s32.totalorder %s64, %s78
    %p80 = scmp.eq.s32.totalorder %s17, 0
    %p81 = por %p79, %p80
    %s83 = sadd.s32 %s82, 1
    %p86 = scmp.eq.s32.totalorder %s11, 1
    %p87 = scmp.ne.s32.totalorder %s82, %s84
    %p88 = scmp.eq.s32.totalorder %s11, 0
    %p89 = por %p87, %p88
    %p90 = scmp.ne.s32.totalorder %s82, %s84
    %p91 = scmp.eq.s32.totalorder %s16, 1
    %p92 = por %p90, %p91
    %p93 = scmp.ne.s32.totalorder %s84, %s85
    %p94 = scmp.eq.s32.totalorder %s16, 0
    %p95 = por %p93, %p94
    %p96 = scmp.ne.s32.totalorder %s84, %s85
    %p97 = scmp.eq.s32.totalorder %s17, 1
    %p98 = por %p96, %p97
    %p100 = scmp.ne.s32.totalorder %s85, %s99
    %p101 = scmp.eq.s32.totalorder %s17, 0
    %p102 = por %p100, %p101
    %s103 = ssub.s32 %s11, %s18
    %p104 = scmp.eq.s32.totalorder %s103, 0
    %s106 = sadd.s32 %s105, 1
    %s107 = scalar_select %p104, %s105, %s106
    %p110 = pneg %p104
    %p111 = scmp.eq.s32.totalorder %s11, 1
    %p112 = por %p110, %p111
    %p113 = scmp.ne.s32.totalorder %s105, %s108
    %p114 = scmp.eq.s32.totalorder %s11, 0
    %p115 = por %p113, %p114
    %p116 = scmp.ne.s32.totalorder %s105, %s108
    %p117 = scmp.eq.s32.totalorder %s16, 1
    %p118 = por %p116, %p117
    %p119 = scmp.ne.s32.totalorder %s108, %s109
    %p120 = scmp.eq.s32.totalorder %s16, 0
    %p121 = por %p119, %p120
    %p122 = scmp.ne.s32.totalorder %s108, %s109
    %p123 = scmp.eq.s32.totalorder %s17, 1
    %p124 = por %p122, %p123
    %p126 = scmp.ne.s32.totalorder %s109, %s125
    %p127 = scmp.eq.s32.totalorder %s17, 0
    %p128 = por %p126, %p127
    %s129 = ssub.s32 %s11, %s18
    %p130 = scmp.eq.s32.totalorder %s129, 0
    %s132 = sadd.s32 %s131, 1
    %s133 = scalar_select %p130, %s131, %s132
    %p136 = pneg %p130
    %p137 = scmp.eq.s32.totalorder %s11, 1
    %p138 = por %p136, %p137
    %p139 = scmp.ne.s32.totalorder %s131, %s134
    %p140 = scmp.eq.s32.totalorder %s11, 0
    %p141 = por %p139, %p140
    %p142 = scmp.ne.s32.totalorder %s131, %s134
    %p143 = scmp.eq.s32.totalorder %s16, 1
    %p144 = por %p142, %p143
    %p145 = scmp.ne.s32.totalorder %s134, %s135
    %p146 = scmp.eq.s32.totalorder %s16, 0
    %p147 = por %p145, %p146
    %p148 = scmp.ne.s32.totalorder %s134, %s135
    %p149 = scmp.eq.s32.totalorder %s17, 1
    %p150 = por %p148, %p149
    %p152 = scmp.ne.s32.totalorder %s135, %s151
    %p153 = scmp.eq.s32.totalorder %s17, 0
    %p154 = por %p152, %p153
    %p155 = scmp.le.s32.totalorder 1, %s11
    %p156 = scmp.lt.s32.totalorder %s11, 3
    %p157 = pnand %p155, %p156
    %p158 = pneg %p157
    // Predicated region
    $region9: #{skip_layer_forward.7} parent=5 // pred_check
      _
    $region10: #{skip_layer_forward.7} parent=5 // pred_check_branch
      %160 = sbr.rel (%p157) target = $region12
    $region11: #{skip_layer_forward.7} parent=5 // pred_region
      %s161 = ssub.s32 %s11, 1
      // Predicated region
      $region13: #{skip_layer_forward.7} parent=11 // pred_check
        %p162 = pneg %p32
      $region14: #{skip_layer_forward.7} parent=11 // pred_check_branch
        %164 = sbr.rel (%p162) target = $region16
      $region15: #{skip_layer_forward.7} parent=11 // pred_region
        _
      $region16: #{skip_layer_forward.7} parent=11 // pred_fallthru
        _
      // Predicated region
      $region17: #{skip_layer_forward.7} parent=11 // pred_check
        %p165 = pneg %p53
      $region18: #{skip_layer_forward.7} parent=11 // pred_check_branch
        %167 = sbr.rel (%p165) target = $region20
      $region19: #{skip_layer_forward.7} parent=11 // pred_region
        _
      $region20: #{skip_layer_forward.7} parent=11 // pred_fallthru
        _
      // Predicated region
      $region21: #{skip_layer_forward.7} parent=11 // pred_check
        %p168 = pneg %p74
      $region22: #{skip_layer_forward.7} parent=11 // pred_check_branch
        %170 = sbr.rel (%p168) target = $region24
      $region23: #{skip_layer_forward.7} parent=11 // pred_region
        _
      $region24: #{skip_layer_forward.7} parent=11 // pred_fallthru
        _
      // Predicated region
      $region25: #{skip_layer_forward.7} parent=11 // pred_check
        %p171 = pneg %p95
      $region26: #{skip_layer_forward.7} parent=11 // pred_check_branch
        %173 = sbr.rel (%p171) target = $region28
      $region27: #{skip_layer_forward.7} parent=11 // pred_region
        _
      $region28: #{skip_layer_forward.7} parent=11 // pred_fallthru
        _
    $region12: #{skip_layer_forward.7} parent=5 // pred_fallthru
      _
    %p174 = scmp.lt.s32.totalorder %s11, 2
    // Predicated region
    $region29: #{skip_layer_forward.7} parent=5 // pred_check
      %p175 = pneg %p174
    $region30: #{skip_layer_forward.7} parent=5 // pred_check_branch
      %177 = sbr.rel (%p175) target = $region32
    $region31: #{skip_layer_forward.7} parent=5 // pred_region
      // Predicated region
      $region33: #{skip_layer_forward.7} parent=31 // pred_check
        %p178 = pneg %p115
      $region34: #{skip_layer_forward.7} parent=31 // pred_check_branch
        %180 = sbr.rel (%p178) target = $region36
      $region35: #{skip_layer_forward.7} parent=31 // pred_region
        %p181 = scmp.lt.s32.totalorder %s11, 1
        %s182 = scalar_select %p181, %s11, 1
        %s183 = smul.addr %s182, 9
        %s184 = smul.addr %s183, 4
        %s185 = scalar_lea.vmem %s4, %s184
      $region36: #{skip_layer_forward.7} parent=31 // pred_fallthru
        _
    $region32: #{skip_layer_forward.7} parent=5 // pred_fallthru
      _
    %p186 = scmp.le.s32.totalorder 1, %s11
    %p187 = scmp.lt.s32.totalorder %s11, 3
    %p188 = pnand %p186, %p187
    %p189 = pneg %p188
    // Predicated region
    $region37: #{skip_layer_forward.7} parent=5 // pred_check
      _
    $region38: #{skip_layer_forward.7} parent=5 // pred_check_branch
      %191 = sbr.rel (%p188) target = $region40
    $region39: #{skip_layer_forward.7} parent=5 // pred_region
      %s192 = ssub.s32 %s11, 1
      %p193 = pneg %p32
      %p194 = pneg %p29
      %p195 = pneg %p53
      %p196 = pneg %p50
      %p197 = pneg %p74
      %p198 = pneg %p71
      %p199 = pneg %p95
      %p200 = pneg %p92
      %p201 = scmp.lt.s32.totalorder %s16, 1
      %s202 = scalar_select %p201, %s16, 1
      %s203 = smul.addr %s202, 9
      %s204 = smul.addr %s203, 4
      %s205 = scalar_lea.vmem %s4, %s204
      %p206 = pneg %p121
      %p207 = pneg %p118
      %p208 = pneg %p147
      %p209 = pneg %p144
      %p210 = scmp.lt.s32.totalorder %s16, 1
      %s211 = scalar_select %p210, %s16, 1
      %s212 = smul.addr %s211, 2
      %s213 = smul.addr %s212, 8
      %s214 = scalar_lea.vmem %s5, %s213
      %p215 = scmp.lt.s32.totalorder %s16, 1
      %s216 = scalar_select %p215, %s16, 1
      %s217 = smul.addr %s216, 9
      %s218 = smul.addr %s217, 4
      %s219 = scalar_lea.vmem %s4, %s218
      %p220 = scmp.lt.s32.totalorder %s16, 1
      %s221 = scalar_select %p220, %s16, 1
      %s222 = smul.addr %s221, 2
      %s223 = smul.addr %s222, 8
      %s224 = scalar_lea.vmem %s5, %s223
      %v226 = vld [vmem:[%s0] sm:$0xf]
      %v227 = vld [vmem:[%s0 + $0x4] sm:$0xf]
      %v228 = vld [vmem:[%s219] sm:$0xf]
      %v229 = vld [vmem:[%s219 + $0x4] sm:$0xf]
      %v230 = vld [vmem:[%s219 + $0x8] sm:$0xf]
      %v231 = vld [vmem:[%s219 + $0xc] sm:$0xf]
      %v232 = vld [vmem:[%s219 + $0x10] sm:$0xf]
      %v233 = vld [vmem:[%s219 + $0x14] sm:$0xf]
      %v234 = vld [vmem:[%s219 + $0x18] sm:$0xf]
      %v235 = vld [vmem:[%s219 + $0x1c] sm:$0xf]
      %v236 = vld [vmem:[%s219 + $0x20] sm:$0xf]
      %v237 = vld [vmem:[%s1] sm:$0xff]
      %v238 = vld [vmem:[%s1 + $0x8] sm:$0xff]
      %240 = vset.pattern.permute.xlu0 0
      %241 = vperm.xlu0 %240, %v237
      %v242 = vpop.permute.xlu0 %241
      %245 = vset.pattern.permute.xlu0 0
      %246 = vperm.xlu0 %245, %v238
      %v247 = vpop.permute.xlu0 %246
      %v251 = vunpack.c.l.b16 %v226
      %v252 = vunpack.c.l.b16 %v227
      %v253 = vpack.c.b16 %v252, %v251
      %v263 = vunpack.c.l.b16 %v228
      %v264 = vunpack.c.l.b16 %v229
      %v265 = vunpack.c.l.b16 %v230
      %v266 = vunpack.c.l.b16 %v231
      %v267 = vunpack.c.l.b16 %v232
      %v268 = vunpack.c.l.b16 %v233
      %v269 = vunpack.c.l.b16 %v234
      %v270 = vunpack.c.l.b16 %v235
      %v271 = vunpack.c.l.b16 %v236
      %v272 = vpack.c.b16 %v264, %v263
      %v273 = vpack.c.b16 %v266, %v265
      %v274 = vpack.c.b16 %v268, %v267
      %v275 = vpack.c.b16 %v270, %v269
      %v276 = vpack.c.b16 %v271, %v271
      %vm281 = vcmask 588800
      %v283 = vsel %vm281, %v253, 0
      %vm285 = vcmask 1043456
      %v287 = vsel %vm285, %v276, 0
      %289 = vmatprep.subr.bf16.mxu0 0
      %290 = vmatpush1.bf16.msra.mxu0 %v272
      %291 = vmatprep.subr.bf16.mxu0 0
      %292 = vmatpush1.bf16.msra.mxu0 %v273
      %293 = vmatprep.subr.bf16.mxu0 0
      %294 = vmatpush1.bf16.msra.mxu0 %v274
      %295 = vmatprep.subr.bf16.mxu0 0
      %296 = vmatpush1.bf16.msra.mxu0 %v275
      %297 = vmatprep.subr.bf16.mxu0 0
      %298 = vmatpush1.bf16.msra.mxu0 %v287
      %299 = vmatprep.subr.bf16.mxu0 0
      %300 = vmatpush1.bf16.msra.mxu0 0
      %301 = vmatprep.subr.bf16.mxu0 0
      %302 = vmatpush1.bf16.msra.mxu0 0
      %303 = vmatprep.subr.bf16.mxu0 0
      %304 = vmatpush1.bf16.msra.mxu0 0
      %305 = vmatprep.subr.bf16.mxu0 0
      %306 = vmatpush1.bf16.msra.mxu0 0
      %307 = vmatprep.subr.bf16.mxu0 0
      %308 = vmatpush1.bf16.msra.mxu0 0
      %309 = vmatprep.subr.bf16.mxu0 0
      %310 = vmatpush1.bf16.msra.mxu0 0
      %311 = vmatprep.subr.bf16.mxu0 0
      %312 = vmatpush1.bf16.msra.mxu0 0
      %313 = vmatprep.subr.bf16.mxu0 0
      %314 = vmatpush1.bf16.msra.mxu0 0
      %315 = vmatprep.subr.bf16.mxu0 0
      %316 = vmatpush1.bf16.msra.mxu0 0
      %317 = vmatprep.subr.bf16.mxu0 0
      %318 = vmatpush1.bf16.msra.mxu0 0
      %319 = vmatprep.subr.bf16.mxu0 0
      %320 = vmatpush1.bf16.msra.mxu0 0
      %321 = vmatprep.mubr.bf16.mxu0 0
      %322 = vmatmul.mubr.bf16.gmra.mrb[0].mxu0 %v283
      %v323 = vpop.f32.mrb[0].mxu0
      %v324 = vadd.f32 %v242, %v323
      %v325 = vpop.f32.mrb[0].mxu0
      %v326 = vpop.f32.mrb[0].mxu0
      %v327 = vadd.f32 %v247, %v326
      %v328 = vpop.f32.mrb[0].mxu0
      %329 = vdwg.mxu0
      %vm330 = vcmask 130048
      %v331 = vsel %vm330, %v324, 0.0
      %332 = vadd.xlane.f32.xlu0 %v331
      %v333 = vpop.xlane.xlu0 %332
      %v334 = vsel %vm330, %v327, 0.0
      %335 = vadd.xlane.f32.xlu0 %v334
      %v336 = vpop.xlane.xlu0 %335
      %v337 = vrcp.pop 16.0
      %v338 = vmul.f32 %v333, %v337
      %v339 = vmul.f32 %v336, %v337
      %v340 = vsub.f32 %v324, %v338
      %v341 = vsub.f32 %v327, %v339
      %v342 = vmul.f32 %v340, %v340
      %v343 = vmul.f32 %v341, %v341
      %v344 = vsel %vm330, %v342, 0.0
      %345 = vadd.xlane.f32.xlu0 %v344
      %v346 = vpop.xlane.xlu0 %345
      %v347 = vsel %vm330, %v343, 0.0
      %348 = vadd.xlane.f32.xlu0 %v347
      %v349 = vpop.xlane.xlu0 %348
      %v350 = vmul.f32 %v346, %v337
      %v351 = vmul.f32 %v349, %v337
      %v352 = vadd.f32 %v350, 1e-05
      %v353 = vadd.f32 %v351, 1e-05
      %v354 = vrsqrt.pop %v352
      %v355 = vrsqrt.pop %v353
      %v356 = vmul.f32 %v340, %v354
      %v357 = vmul.f32 %v341, %v355
      %v358 = vld [vmem:[%s2] sm:$0xff]
      %v359 = vld [vmem:[%s2 + $0x8] sm:$0xff]
      %361 = vset.pattern.permute.xlu0 0
      %362 = vperm.xlu0 %361, %v358
      %v363 = vpop.permute.xlu0 %362
      %366 = vset.pattern.permute.xlu0 0
      %367 = vperm.xlu0 %366, %v359
      %v368 = vpop.permute.xlu0 %367
      %v370 = vmul.f32 %v356, %v363
      %v371 = vmul.f32 %v357, %v368
      %v372 = vld [vmem:[%s3] sm:$0xff]
      %v373 = vld [vmem:[%s3 + $0x8] sm:$0xff]
      %375 = vset.pattern.permute.xlu0 0
      %376 = vperm.xlu0 %375, %v372
      %v377 = vpop.permute.xlu0 %376
      %380 = vset.pattern.permute.xlu0 0
      %381 = vperm.xlu0 %380, %v373
      %v382 = vpop.permute.xlu0 %381
      %v384 = vadd.f32 %v370, %v377
      %v385 = vadd.f32 %v371, %v382
      %vm386 = vcmp.ge.f32.partialorder %v384, 0.0
      %vm387 = vcmp.ge.f32.partialorder %v385, 0.0
      %v388 = vmul.f32 %v384, 0.01
      %v389 = vmul.f32 %v385, 0.01
      %v390 = vsel %vm386, %v384, %v388
      %v391 = vsel %vm387, %v385, %v389
      %392 = vst.msk [vmem:[%s224] sm:$0xff] %vm330, %v390
      %393 = vst.msk [vmem:[%s224 + $0x8] sm:$0xff] %vm330, %v391
      %p394 = scmp.lt.s32.totalorder %s16, 1
      %s395 = scalar_select %p394, %s16, 1
      %s396 = smul.addr %s395, 2
      %s397 = smul.addr %s396, 8
      %s398 = scalar_lea.vmem %s5, %s397
      // Predicated region
      $region41: #{skip_layer_forward.7} parent=39 // pred_check
        %p399 = pneg %p144
      $region42: #{skip_layer_forward.7} parent=39 // pred_check_branch
        %401 = sbr.rel (%p399) target = $region44
      $region43: #{skip_layer_forward.7} parent=39 // pred_region
        _
      $region44: #{skip_layer_forward.7} parent=39 // pred_fallthru
        _
    $region40: #{skip_layer_forward.7} parent=5 // pred_fallthru
      _
    %p402 = scmp.le.s32.totalorder 2, %s11
    // Predicated region
    $region45: #{skip_layer_forward.7} parent=5 // pred_check
      %p403 = pneg %p402
    $region46: #{skip_layer_forward.7} parent=5 // pred_check_branch
      %405 = sbr.rel (%p403) target = $region48
    $region47: #{skip_layer_forward.7} parent=5 // pred_region
      %s406 = ssub.s32 %s11, 2
      // Predicated region
      $region49: #{skip_layer_forward.7} parent=47 // pred_check
        %p407 = pneg %p150
      $region50: #{skip_layer_forward.7} parent=47 // pred_check_branch
        %409 = sbr.rel (%p407) target = $region52
      $region51: #{skip_layer_forward.7} parent=47 // pred_region
        %p410 = scmp.lt.s32.totalorder %s17, 1
        %s411 = scalar_select %p410, %s17, 1
        %s412 = smul.addr %s411, 2
        %s413 = smul.addr %s412, 8
        %s414 = scalar_lea.vmem %s5, %s413
      $region52: #{skip_layer_forward.7} parent=47 // pred_fallthru
        _
    $region48: #{skip_layer_forward.7} parent=5 // pred_fallthru
      _
  $region6: #{skip_layer_forward.7} parent=0 // loop_footer
    %s15 = sadd.s32 1, %s11
  $region7: #{skip_layer_forward.7} parent=0 // loop_footer_branch
    %10 = sbr.rel target = $region3
  $region8: #{skip_layer_forward.7} parent=0 // loop_exit
    _

// kernel: skip_layer_forward.8
$region0: #{skip_layer_forward.8}
  #allocation0 [shape = 'u32[]', space=smem, size = 0x4, offset = 0x4, fixed_abs, tag = 'smem constant byte address 0x4 - core index']
  #allocation1 [shape = 'u32[144,128]{1,0:T(1,128)}', space=vmem, size = 0x12000, scoped, tag = 'internal scratch']
  %s0 = inlined_call_operand.vmem [shape: bf16[32,16], index: 0, kind: input, shape index: {}]
  %s1 = inlined_call_operand.vmem [shape: f32[32,1], index: 1, kind: input, shape index: {}]
  %s2 = inlined_call_operand.vmem [shape: f32[2,16,16], index: 2, kind: input, shape index: {}]
  %s3 = inlined_call_operand.vmem [shape: f32[2,32,16], index: 3, kind: output, shape index: {}]
  %s4 = sld [smem:[#allocation0]]
  $region45: #{skip_layer_forward.8} parent=0
    _
  %s6 = ssub.s32 1, %s4
  %s7 = scalar_select 0, %s6, %s4
  loop: start=0, step=1, limit=4
  $region2: #{skip_layer_forward.8} parent=0 // loop_pre_header
    _
  $region3: #{skip_layer_forward.8} parent=0 // loop_header
    %s9 = sphi 0, %s13
    %p10 = scmp.ge.s32.totalorder %s9, 4
    %s17 = sphi 0, %s17
    %s19 = sphi 0, %s17
    %s20 = sphi 0, %s19
    %s34 = sphi 0, %s20
    %s38 = sphi 0, %s38
    %s40 = sphi 0, %s38
    %s41 = sphi 0, %s40
    %s55 = sphi 0, %s41
    %s61 = sphi 0, %s63
    %s64 = sphi 0, %s61
    %s65 = sphi 0, %s64
    %s81 = sphi 0, %s65
    %s87 = sphi 0, %s89
    %s90 = sphi 0, %s87
    %s91 = sphi 0, %s90
    %s107 = sphi 0, %s91
  $region4: #{skip_layer_forward.8} parent=0 // loop_header_branch
    %12 = sbr.rel (%p10) target = $region8
  $region5: #{skip_layer_forward.8} parent=0 // loop_body
    %s14 = ssub.s32 %s9, 1
    %s15 = ssub.s32 %s9, 2
    %s16 = sadd.s32 %s9, 1
    %s18 = sadd.s32 %s17, 1
    %p21 = scmp.eq.s32.totalorder %s9, 1
    %p22 = scmp.ne.s32.totalorder %s17, %s19
    %p23 = scmp.eq.s32.totalorder %s9, 0
    %p24 = por %p22, %p23
    %p25 = scmp.ne.s32.totalorder %s17, %s19
    %p26 = scmp.eq.s32.totalorder %s14, 1
    %p27 = por %p25, %p26
    %p28 = scmp.ne.s32.totalorder %s19, %s20
    %p29 = scmp.eq.s32.totalorder %s14, 0
    %p30 = por %p28, %p29
    %p31 = scmp.ne.s32.totalorder %s19, %s20
    %p32 = scmp.eq.s32.totalorder %s15, 1
    %p33 = por %p31, %p32
    %p35 = scmp.ne.s32.totalorder %s20, %s34
    %p36 = scmp.eq.s32.totalorder %s15, 0
    %p37 = por %p35, %p36
    %s39 = sadd.s32 %s38, 1
    %p42 = scmp.eq.s32.totalorder %s9, 1
    %p43 = scmp.ne.s32.totalorder %s38, %s40
    %p44 = scmp.eq.s32.totalorder %s9, 0
    %p45 = por %p43, %p44
    %p46 = scmp.ne.s32.totalorder %s38, %s40
    %p47 = scmp.eq.s32.totalorder %s14, 1
    %p48 = por %p46, %p47
    %p49 = scmp.ne.s32.totalorder %s40, %s41
    %p50 = scmp.eq.s32.totalorder %s14, 0
    %p51 = por %p49, %p50
    %p52 = scmp.ne.s32.totalorder %s40, %s41
    %p53 = scmp.eq.s32.totalorder %s15, 1
    %p54 = por %p52, %p53
    %p56 = scmp.ne.s32.totalorder %s41, %s55
    %p57 = scmp.eq.s32.totalorder %s15, 0
    %p58 = por %p56, %p57
    %s59 = ssub.s32 %s9, %s16
    %p60 = scmp.eq.s32.totalorder %s59, 0
    %s62 = sadd.s32 %s61, 1
    %s63 = scalar_select %p60, %s61, %s62
    %p66 = pneg %p60
    %p67 = scmp.eq.s32.totalorder %s9, 1
    %p68 = por %p66, %p67
    %p69 = scmp.ne.s32.totalorder %s61, %s64
    %p70 = scmp.eq.s32.totalorder %s9, 0
    %p71 = por %p69, %p70
    %p72 = scmp.ne.s32.totalorder %s61, %s64
    %p73 = scmp.eq.s32.totalorder %s14, 1
    %p74 = por %p72, %p73
    %p75 = scmp.ne.s32.totalorder %s64, %s65
    %p76 = scmp.eq.s32.totalorder %s14, 0
    %p77 = por %p75, %p76
    %p78 = scmp.ne.s32.totalorder %s64, %s65
    %p79 = scmp.eq.s32.totalorder %s15, 1
    %p80 = por %p78, %p79
    %p82 = scmp.ne.s32.totalorder %s65, %s81
    %p83 = scmp.eq.s32.totalorder %s15, 0
    %p84 = por %p82, %p83
    %s85 = ssub.s32 %s9, %s16
    %p86 = scmp.eq.s32.totalorder %s85, 0
    %s88 = sadd.s32 %s87, 1
    %s89 = scalar_select %p86, %s87, %s88
    %p92 = pneg %p86
    %p93 = scmp.eq.s32.totalorder %s9, 1
    %p94 = por %p92, %p93
    %p95 = scmp.ne.s32.totalorder %s87, %s90
    %p96 = scmp.eq.s32.totalorder %s9, 0
    %p97 = por %p95, %p96
    %p98 = scmp.ne.s32.totalorder %s87, %s90
    %p99 = scmp.eq.s32.totalorder %s14, 1
    %p100 = por %p98, %p99
    %p101 = scmp.ne.s32.totalorder %s90, %s91
    %p102 = scmp.eq.s32.totalorder %s14, 0
    %p103 = por %p101, %p102
    %p104 = scmp.ne.s32.totalorder %s90, %s91
    %p105 = scmp.eq.s32.totalorder %s15, 1
    %p106 = por %p104, %p105
    %p108 = scmp.ne.s32.totalorder %s91, %s107
    %p109 = scmp.eq.s32.totalorder %s15, 0
    %p110 = por %p108, %p109
    %p111 = scmp.le.s32.totalorder 1, %s9
    %p112 = scmp.lt.s32.totalorder %s9, 3
    %p113 = pnand %p111, %p112
    %p114 = pneg %p113
    // Predicated region
    $region9: #{skip_layer_forward.8} parent=5 // pred_check
      _
    $region10: #{skip_layer_forward.8} parent=5 // pred_check_branch
      %116 = sbr.rel (%p113) target = $region12
    $region11: #{skip_layer_forward.8} parent=5 // pred_region
      %s117 = ssub.s32 %s9, 1
      // Predicated region
      $region13: #{skip_layer_forward.8} parent=11 // pred_check
        %p118 = pneg %p30
      $region14: #{skip_layer_forward.8} parent=11 // pred_check_branch
        %120 = sbr.rel (%p118) target = $region16
      $region15: #{skip_layer_forward.8} parent=11 // pred_region
        _
      $region16: #{skip_layer_forward.8} parent=11 // pred_fallthru
        _
      // Predicated region
      $region17: #{skip_layer_forward.8} parent=11 // pred_check
        %p121 = pneg %p51
      $region18: #{skip_layer_forward.8} parent=11 // pred_check_branch
        %123 = sbr.rel (%p121) target = $region20
      $region19: #{skip_layer_forward.8} parent=11 // pred_region
        _
      $region20: #{skip_layer_forward.8} parent=11 // pred_fallthru
        _
    $region12: #{skip_layer_forward.8} parent=5 // pred_fallthru
      _
    %p124 = scmp.lt.s32.totalorder %s9, 2
    // Predicated region
    $region21: #{skip_layer_forward.8} parent=5 // pred_check
      %p125 = pneg %p124
    $region22: #{skip_layer_forward.8} parent=5 // pred_check_branch
      %127 = sbr.rel (%p125) target = $region24
    $region23: #{skip_layer_forward.8} parent=5 // pred_region
      // Predicated region
      $region25: #{skip_layer_forward.8} parent=23 // pred_check
        %p128 = pneg %p71
      $region26: #{skip_layer_forward.8} parent=23 // pred_check_branch
        %130 = sbr.rel (%p128) target = $region28
      $region27: #{skip_layer_forward.8} parent=23 // pred_region
        %p131 = scmp.lt.s32.totalorder %s9, 1
        %s132 = scalar_select %p131, %s9, 1
        %s133 = smul.addr %s132, 2
        %s134 = smul.addr %s133, 8
        %s135 = scalar_lea.vmem %s2, %s134
      $region28: #{skip_layer_forward.8} parent=23 // pred_fallthru
        _
    $region24: #{skip_layer_forward.8} parent=5 // pred_fallthru
      _
    %p136 = scmp.le.s32.totalorder 1, %s9
    %p137 = scmp.lt.s32.totalorder %s9, 3
    %p138 = pnand %p136, %p137
    %p139 = pneg %p138
    // Predicated region
    $region29: #{skip_layer_forward.8} parent=5 // pred_check
      _
    $region30: #{skip_layer_forward.8} parent=5 // pred_check_branch
      %141 = sbr.rel (%p138) target = $region32
    $region31: #{skip_layer_forward.8} parent=5 // pred_region
      %s142 = ssub.s32 %s9, 1
      %p143 = pneg %p30
      %p144 = pneg %p27
      %p145 = pneg %p51
      %p146 = pneg %p48
      %p147 = scmp.lt.s32.totalorder %s14, 1
      %s148 = scalar_select %p147, %s14, 1
      %s149 = smul.addr %s148, 2
      %s150 = smul.addr %s149, 8
      %s151 = scalar_lea.vmem %s2, %s150
      %p152 = pneg %p77
      %p153 = pneg %p74
      %p154 = pneg %p103
      %p155 = pneg %p100
      %p156 = scmp.lt.s32.totalorder %s14, 1
      %s157 = scalar_select %p156, %s14, 1
      %s158 = smul.addr %s157, 4
      %s159 = smul.addr %s158, 8
      %s160 = scalar_lea.vmem %s3, %s159
      %p161 = scmp.lt.s32.totalorder %s14, 1
      %s162 = scalar_select %p161, %s14, 1
      %s163 = smul.addr %s162, 2
      %s164 = smul.addr %s163, 8
      %s165 = scalar_lea.vmem %s2, %s164
      %p166 = scmp.lt.s32.totalorder %s14, 1
      %s167 = scalar_select %p166, %s14, 1
      %s168 = smul.addr %s167, 4
      %s169 = smul.addr %s168, 8
      %s170 = scalar_lea.vmem %s3, %s169
      %v172 = vld [vmem:[%s0] sm:$0xf]
      %v173 = vld [vmem:[%s0 + $0x4] sm:$0xf]
      %v174 = vld [vmem:[%s0 + $0x8] sm:$0xf]
      %v175 = vld [vmem:[%s0 + $0xc] sm:$0xf]
      %v176 = vld [vmem:[%s165] sm:$0xff]
      %v177 = vld [vmem:[%s165 + $0x8] sm:$0xff]
      %v178 = vpack.c.bf16 %v177, %v176
      %v179 = vld [vmem:[%s1] sm:$0xff]
      %v180 = vld [vmem:[%s1 + $0x8] sm:$0xff]
      %v181 = vld [vmem:[%s1 + $0x10] sm:$0xff]
      %v182 = vld [vmem:[%s1 + $0x18] sm:$0xff]
      %184 = vset.pattern.permute.xlu0 0
      %185 = vperm.xlu0 %184, %v179
      %v186 = vpop.permute.xlu0 %185
      %189 = vset.pattern.permute.xlu0 0
      %190 = vperm.xlu0 %189, %v180
      %v191 = vpop.permute.xlu0 %190
      %194 = vset.pattern.permute.xlu0 0
      %195 = vperm.xlu0 %194, %v181
      %v196 = vpop.permute.xlu0 %195
      %199 = vset.pattern.permute.xlu0 0
      %200 = vperm.xlu0 %199, %v182
      %v201 = vpop.permute.xlu0 %200
      %v207 = vunpack.c.l.b16 %v172
      %v208 = vunpack.c.l.b16 %v173
      %v209 = vunpack.c.l.b16 %v174
      %v210 = vunpack.c.l.b16 %v175
      %v211 = vpack.c.b16 %v208, %v207
      %v212 = vpack.c.b16 %v210, %v209
      %vm213 = vcmask 130048
      %v215 = vsel %vm213, %v211, 0
      %v218 = vsel %vm213, %v212, 0
      %220 = vmatprep.subr.bf16.mxu0 0
      %221 = vmatpush1.bf16.msra.mxu0 %v178
      %222 = vmatprep.subr.bf16.mxu0 0
      %223 = vmatpush1.bf16.msra.mxu0 0
      %224 = vmatprep.subr.bf16.mxu0 0
      %225 = vmatpush1.bf16.msra.mxu0 0
      %226 = vmatprep.subr.bf16.mxu0 0
      %227 = vmatpush1.bf16.msra.mxu0 0
      %228 = vmatprep.subr.bf16.mxu0 0
      %229 = vmatpush1.bf16.msra.mxu0 0
      %230 = vmatprep.subr.bf16.mxu0 0
      %231 = vmatpush1.bf16.msra.mxu0 0
      %232 = vmatprep.subr.bf16.mxu0 0
      %233 = vmatpush1.bf16.msra.mxu0 0
      %234 = vmatprep.subr.bf16.mxu0 0
      %235 = vmatpush1.bf16.msra.mxu0 0
      %236 = vmatprep.subr.bf16.mxu0 0
      %237 = vmatpush1.bf16.msra.mxu0 0
      %238 = vmatprep.subr.bf16.mxu0 0
      %239 = vmatpush1.bf16.msra.mxu0 0
      %240 = vmatprep.subr.bf16.mxu0 0
      %241 = vmatpush1.bf16.msra.mxu0 0
      %242 = vmatprep.subr.bf16.mxu0 0
      %243 = vmatpush1.bf16.msra.mxu0 0
      %244 = vmatprep.subr.bf16.mxu0 0
      %245 = vmatpush1.bf16.msra.mxu0 0
      %246 = vmatprep.subr.bf16.mxu0 0
      %247 = vmatpush1.bf16.msra.mxu0 0
      %248 = vmatprep.subr.bf16.mxu0 0
      %249 = vmatpush1.bf16.msra.mxu0 0
      %250 = vmatprep.subr.bf16.mxu0 0
      %251 = vmatpush1.bf16.msra.mxu0 0
      %252 = vmatprep.mubr.bf16.mxu0 0
      %253 = vmatmul.mubr.bf16.gmra.mrb[0].mxu0 %v215
      %v254 = vpop.f32.mrb[0].mxu0
      %v255 = vadd.f32 %v186, %v254
      %v256 = vpop.f32.mrb[0].mxu0
      %v257 = vpop.f32.mrb[0].mxu0
      %v258 = vadd.f32 %v191, %v257
      %v259 = vpop.f32.mrb[0].mxu0
      %260 = vmatprep.mubr.bf16.mxu0 0
      %261 = vmatmul.mubr.bf16.gmra.mrb[0].mxu0 %v218
      %v262 = vpop.f32.mrb[0].mxu0
      %v263 = vadd.f32 %v196, %v262
      %v264 = vpop.f32.mrb[0].mxu0
      %v265 = vpop.f32.mrb[0].mxu0
      %v266 = vadd.f32 %v201, %v265
      %v267 = vpop.f32.mrb[0].mxu0
      %268 = vdwg.mxu0
      %269 = vst.msk [vmem:[%s170] sm:$0xff] %vm213, %v255
      %270 = vst.msk [vmem:[%s170 + $0x8] sm:$0xff] %vm213, %v258
      %271 = vst.msk [vmem:[%s170 + $0x10] sm:$0xff] %vm213, %v263
      %272 = vst.msk [vmem:[%s170 + $0x18] sm:$0xff] %vm213, %v266
      %p273 = scmp.lt.s32.totalorder %s14, 1
      %s274 = scalar_select %p273, %s14, 1
      %s275 = smul.addr %s274, 4
      %s276 = smul.addr %s275, 8
      %s277 = scalar_lea.vmem %s3, %s276
      // Predicated region
      $region33: #{skip_layer_forward.8} parent=31 // pred_check
        %p278 = pneg %p100
      $region34: #{skip_layer_forward.8} parent=31 // pred_check_branch
        %280 = sbr.rel (%p278) target = $region36
      $region35: #{skip_layer_forward.8} parent=31 // pred_region
        _
      $region36: #{skip_layer_forward.8} parent=31 // pred_fallthru
        _
    $region32: #{skip_layer_forward.8} parent=5 // pred_fallthru
      _
    %p281 = scmp.le.s32.totalorder 2, %s9
    // Predicated region
    $region37: #{skip_layer_forward.8} parent=5 // pred_check
      %p282 = pneg %p281
    $region38: #{skip_layer_forward.8} parent=5 // pred_check_branch
      %284 = sbr.rel (%p282) target = $region40
    $region39: #{skip_layer_forward.8} parent=5 // pred_region
      %s285 = ssub.s32 %s9, 2
      // Predicated region
      $region41: #{skip_layer_forward.8} parent=39 // pred_check
        %p286 = pneg %p106
      $region42: #{skip_layer_forward.8} parent=39 // pred_check_branch
        %288 = sbr.rel (%p286) target = $region44
      $region43: #{skip_layer_forward.8} parent=39 // pred_region
        %p289 = scmp.lt.s32.totalorder %s15, 1
        %s290 = scalar_select %p289, %s15, 1
        %s291 = smul.addr %s290, 4
        %s292 = smul.addr %s291, 8
        %s293 = scalar_lea.vmem %s3, %s292
      $region44: #{skip_layer_forward.8} parent=39 // pred_fallthru
        _
    $region40: #{skip_layer_forward.8} parent=5 // pred_fallthru
      _
  $region6: #{skip_layer_forward.8} parent=0 // loop_footer
    %s13 = sadd.s32 1, %s9
  $region7: #{skip_layer_forward.8} parent=0 // loop_footer_branch
    %8 = sbr.rel target = $region3
  $region8: #{skip_layer_forward.8} parent=0 // loop_exit
    _

// kernel: skip_layer_forward.9
$region0: #{skip_layer_forward.9}
  #allocation0 [shape = 'u32[]', space=smem, size = 0x4, offset = 0x4, fixed_abs, tag = 'smem constant byte address 0x4 - core index']
  #allocation1 [shape = 'u32[144,128]{1,0:T(1,128)}', space=vmem, size = 0x12000, scoped, tag = 'internal scratch']
  %s0 = inlined_call_operand.vmem [shape: bf16[8,72], index: 0, kind: input, shape index: {}]
  %s1 = inlined_call_operand.vmem [shape: bf16[8,72], index: 1, kind: input, shape index: {}]
  %s2 = inlined_call_operand.vmem [shape: f32[8,1], index: 2, kind: input, shape index: {}]
  %s3 = inlined_call_operand.vmem [shape: f32[8,1], index: 3, kind: input, shape index: {}]
  %s4 = inlined_call_operand.vmem [shape: f32[8,1], index: 4, kind: input, shape index: {}]
  %s5 = inlined_call_operand.vmem [shape: bf16[2,8], index: 5, kind: input, shape index: {}]
  %s6 = inlined_call_operand.vmem [shape: f32[2,1], index: 6, kind: input, shape index: {}]
  %s7 = inlined_call_operand.vmem [shape: bf16[2,72,64], index: 7, kind: input, shape index: {}]
  %s8 = inlined_call_operand.vmem [shape: bf16[2,72,64], index: 8, kind: input, shape index: {}]
  %s9 = inlined_call_operand.vmem [shape: f32[2,8,64], index: 9, kind: output, shape index: {0}]
  %s10 = inlined_call_operand.vmem [shape: f32[2,2,64], index: 10, kind: output, shape index: {1}]
  %11 = xla_tuple %s9, %s10
  %s12 = sld [smem:[#allocation0]]
  $region77: #{skip_layer_forward.9} parent=0
    _
  %s14 = ssub.s32 1, %s12
  %s15 = scalar_select 0, %s14, %s12
  loop: start=0, step=1, limit=4
  $region2: #{skip_layer_forward.9} parent=0 // loop_pre_header
    _
  $region3: #{skip_layer_forward.9} parent=0 // loop_header
    %s17 = sphi 0, %s21
    %p18 = scmp.ge.s32.totalorder %s17, 4
    %s25 = sphi 0, %s25
    %s27 = sphi 0, %s25
    %s28 = sphi 0, %s27
    %s42 = sphi 0, %s28
    %s46 = sphi 0, %s46
    %s48 = sphi 0, %s46
    %s49 = sphi 0, %s48
    %s63 = sphi 0, %s49
    %s67 = sphi 0, %s67
    %s69 = sphi 0, %s67
    %s70 = sphi 0, %s69
    %s84 = sphi 0, %s70
    %s88 = sphi 0, %s88
    %s90 = sphi 0, %s88
    %s91 = sphi 0, %s90
    %s105 = sphi 0, %s91
    %s109 = sphi 0, %s109
    %s111 = sphi 0, %s109
    %s112 = sphi 0, %s111
    %s126 = sphi 0, %s112
    %s130 = sphi 0, %s130
    %s132 = sphi 0, %s130
    %s133 = sphi 0, %s132
    %s147 = sphi 0, %s133
    %s151 = sphi 0, %s151
    %s153 = sphi 0, %s151
    %s154 = sphi 0, %s153
    %s168 = sphi 0, %s154
    %s174 = sphi 0, %s176
    %s177 = sphi 0, %s174
    %s178 = sphi 0, %s177
    %s194 = sphi 0, %s178
    %s200 = sphi 0, %s202
    %s203 = sphi 0, %s200
    %s204 = sphi 0, %s203
    %s220 = sphi 0, %s204
    %s226 = sphi 0, %s228
    %s229 = sphi 0, %s226
    %s230 = sphi 0, %s229
    %s246 = sphi 0, %s230
    %s252 = sphi 0, %s254
    %s255 = sphi 0, %s252
    %s256 = sphi 0, %s255
    %s272 = sphi 0, %s256
  $region4: #{skip_layer_forward.9} parent=0 // loop_header_branch
    %20 = sbr.rel (%p18) target = $region8
  $region5: #{skip_layer_forward.9} parent=0 // loop_body
    %s22 = ssub.s32 %s17, 1
    %s23 = ssub.s32 %s17, 2
    %s24 = sadd.s32 %s17, 1
    %s26 = sadd.s32 %s25, 1
    %p29 = scmp.eq.s32.totalorder %s17, 1
    %p30 = scmp.ne.s32.totalorder %s25, %s27
    %p31 = scmp.eq.s32.totalorder %s17, 0
    %p32 = por %p30, %p31
    %p33 = scmp.ne.s32.totalorder %s25, %s27
    %p34 = scmp.eq.s32.totalorder %s22, 1
    %p35 = por %p33, %p34
    %p36 = scmp.ne.s32.totalorder %s27, %s28
    %p37 = scmp.eq.s32.totalorder %s22, 0
    %p38 = por %p36, %p37
    %p39 = scmp.ne.s32.totalorder %s27, %s28
    %p40 = scmp.eq.s32.totalorder %s23, 1
    %p41 = por %p39, %p40
    %p43 = scmp.ne.s32.totalorder %s28, %s42
    %p44 = scmp.eq.s32.totalorder %s23, 0
    %p45 = por %p43, %p44
    %s47 = sadd.s32 %s46, 1
    %p50 = scmp.eq.s32.totalorder %s17, 1
    %p51 = scmp.ne.s32.totalorder %s46, %s48
    %p52 = scmp.eq.s32.totalorder %s17, 0
    %p53 = por %p51, %p52
    %p54 = scmp.ne.s32.totalorder %s46, %s48
    %p55 = scmp.eq.s32.totalorder %s22, 1
    %p56 = por %p54, %p55
    %p57 = scmp.ne.s32.totalorder %s48, %s49
    %p58 = scmp.eq.s32.totalorder %s22, 0
    %p59 = por %p57, %p58
    %p60 = scmp.ne.s32.totalorder %s48, %s49
    %p61 = scmp.eq.s32.totalorder %s23, 1
    %p62 = por %p60, %p61
    %p64 = scmp.ne.s32.totalorder %s49, %s63
    %p65 = scmp.eq.s32.totalorder %s23, 0
    %p66 = por %p64, %p65
    %s68 = sadd.s32 %s67, 1
    %p71 = scmp.eq.s32.totalorder %s17, 1
    %p72 = scmp.ne.s32.totalorder %s67, %s69
    %p73 = scmp.eq.s32.totalorder %s17, 0
    %p74 = por %p72, %p73
    %p75 = scmp.ne.s32.totalorder %s67, %s69
    %p76 = scmp.eq.s32.totalorder %s22, 1
    %p77 = por %p75, %p76
    %p78 = scmp.ne.s32.totalorder %s69, %s70
    %p79 = scmp.eq.s32.totalorder %s22, 0
    %p80 = por %p78, %p79
    %p81 = scmp.ne.s32.totalorder %s69, %s70
    %p82 = scmp.eq.s32.totalorder %s23, 1
    %p83 = por %p81, %p82
    %p85 = scmp.ne.s32.totalorder %s70, %s84
    %p86 = scmp.eq.s32.totalorder %s23, 0
    %p87 = por %p85, %p86
    %s89 = sadd.s32 %s88, 1
    %p92 = scmp.eq.s32.totalorder %s17, 1
    %p93 = scmp.ne.s32.totalorder %s88, %s90
    %p94 = scmp.eq.s32.totalorder %s17, 0
    %p95 = por %p93, %p94
    %p96 = scmp.ne.s32.totalorder %s88, %s90
    %p97 = scmp.eq.s32.totalorder %s22, 1
    %p98 = por %p96, %p97
    %p99 = scmp.ne.s32.totalorder %s90, %s91
    %p100 = scmp.eq.s32.totalorder %s22, 0
    %p101 = por %p99, %p100
    %p102 = scmp.ne.s32.totalorder %s90, %s91
    %p103 = scmp.eq.s32.totalorder %s23, 1
    %p104 = por %p102, %p103
    %p106 = scmp.ne.s32.totalorder %s91, %s105
    %p107 = scmp.eq.s32.totalorder %s23, 0
    %p108 = por %p106, %p107
    %s110 = sadd.s32 %s109, 1
    %p113 = scmp.eq.s32.totalorder %s17, 1
    %p114 = scmp.ne.s32.totalorder %s109, %s111
    %p115 = scmp.eq.s32.totalorder %s17, 0
    %p116 = por %p114, %p115
    %p117 = scmp.ne.s32.totalorder %s109, %s111
    %p118 = scmp.eq.s32.totalorder %s22, 1
    %p119 = por %p117, %p118
    %p120 = scmp.ne.s32.totalorder %s111, %s112
    %p121 = scmp.eq.s32.totalorder %s22, 0
    %p122 = por %p120, %p121
    %p123 = scmp.ne.s32.totalorder %s111, %s112
    %p124 = scmp.eq.s32.totalorder %s23, 1
    %p125 = por %p123, %p124
    %p127 = scmp.ne.s32.totalorder %s112, %s126
    %p128 = scmp.eq.s32.totalorder %s23, 0
    %p129 = por %p127, %p128
    %s131 = sadd.s32 %s130, 1
    %p134 = scmp.eq.s32.totalorder %s17, 1
    %p135 = scmp.ne.s32.totalorder %s130, %s132
    %p136 = scmp.eq.s32.totalorder %s17, 0
    %p137 = por %p135, %p136
    %p138 = scmp.ne.s32.totalorder %s130, %s132
    %p139 = scmp.eq.s32.totalorder %s22, 1
    %p140 = por %p138, %p139
    %p141 = scmp.ne.s32.totalorder %s132, %s133
    %p142 = scmp.eq.s32.totalorder %s22, 0
    %p143 = por %p141, %p142
    %p144 = scmp.ne.s32.totalorder %s132, %s133
    %p145 = scmp.eq.s32.totalorder %s23, 1
    %p146 = por %p144, %p145
    %p148 = scmp.ne.s32.totalorder %s133, %s147
    %p149 = scmp.eq.s32.totalorder %s23, 0
    %p150 = por %p148, %p149
    %s152 = sadd.s32 %s151, 1
    %p155 = scmp.eq.s32.totalorder %s17, 1
    %p156 = scmp.ne.s32.totalorder %s151, %s153
    %p157 = scmp.eq.s32.totalorder %s17, 0
    %p158 = por %p156, %p157
    %p159 = scmp.ne.s32.totalorder %s151, %s153
    %p160 = scmp.eq.s32.totalorder %s22, 1
    %p161 = por %p159, %p160
    %p162 = scmp.ne.s32.totalorder %s153, %s154
    %p163 = scmp.eq.s32.totalorder %s22, 0
    %p164 = por %p162, %p163
    %p165 = scmp.ne.s32.totalorder %s153, %s154
    %p166 = scmp.eq.s32.totalorder %s23, 1
    %p167 = por %p165, %p166
    %p169 = scmp.ne.s32.totalorder %s154, %s168
    %p170 = scmp.eq.s32.totalorder %s23, 0
    %p171 = por %p169, %p170
    %s172 = ssub.s32 %s17, %s24
    %p173 = scmp.eq.s32.totalorder %s172, 0
    %s175 = sadd.s32 %s174, 1
    %s176 = scalar_select %p173, %s174, %s175
    %p179 = pneg %p173
    %p180 = scmp.eq.s32.totalorder %s17, 1
    %p181 = por %p179, %p180
    %p182 = scmp.ne.s32.totalorder %s174, %s177
    %p183 = scmp.eq.s32.totalorder %s17, 0
    %p184 = por %p182, %p183
    %p185 = scmp.ne.s32.totalorder %s174, %s177
    %p186 = scmp.eq.s32.totalorder %s22, 1
    %p187 = por %p185, %p186
    %p188 = scmp.ne.s32.totalorder %s177, %s178
    %p189 = scmp.eq.s32.totalorder %s22, 0
    %p190 = por %p188, %p189
    %p191 = scmp.ne.s32.totalorder %s177, %s178
    %p192 = scmp.eq.s32.totalorder %s23, 1
    %p193 = por %p191, %p192
    %p195 = scmp.ne.s32.totalorder %s178, %s194
    %p196 = scmp.eq.s32.totalorder %s23, 0
    %p197 = por %p195, %p196
    %s198 = ssub.s32 %s17, %s24
    %p199 = scmp.eq.s32.totalorder %s198, 0
    %s201 = sadd.s32 %s200, 1
    %s202 = scalar_select %p199, %s200, %s201
    %p205 = pneg %p199
    %p206 = scmp.eq.s32.totalorder %s17, 1
    %p207 = por %p205, %p206
    %p208 = scmp.ne.s32.totalorder %s200, %s203
    %p209 = scmp.eq.s32.totalorder %s17, 0
    %p210 = por %p208, %p209
    %p211 = scmp.ne.s32.totalorder %s200, %s203
    %p212 = scmp.eq.s32.totalorder %s22, 1
    %p213 = por %p211, %p212
    %p214 = scmp.ne.s32.totalorder %s203, %s204
    %p215 = scmp.eq.s32.totalorder %s22, 0
    %p216 = por %p214, %p215
    %p217 = scmp.ne.s32.totalorder %s203, %s204
    %p218 = scmp.eq.s32.totalorder %s23, 1
    %p219 = por %p217, %p218
    %p221 = scmp.ne.s32.totalorder %s204, %s220
    %p222 = scmp.eq.s32.totalorder %s23, 0
    %p223 = por %p221, %p222
    %s224 = ssub.s32 %s17, %s24
    %p225 = scmp.eq.s32.totalorder %s224, 0
    %s227 = sadd.s32 %s226, 1
    %s228 = scalar_select %p225, %s226, %s227
    %p231 = pneg %p225
    %p232 = scmp.eq.s32.totalorder %s17, 1
    %p233 = por %p231, %p232
    %p234 = scmp.ne.s32.totalorder %s226, %s229
    %p235 = scmp.eq.s32.totalorder %s17, 0
    %p236 = por %p234, %p235
    %p237 = scmp.ne.s32.totalorder %s226, %s229
    %p238 = scmp.eq.s32.totalorder %s22, 1
    %p239 = por %p237, %p238
    %p240 = scmp.ne.s32.totalorder %s229, %s230
    %p241 = scmp.eq.s32.totalorder %s22, 0
    %p242 = por %p240, %p241
    %p243 = scmp.ne.s32.totalorder %s229, %s230
    %p244 = scmp.eq.s32.totalorder %s23, 1
    %p245 = por %p243, %p244
    %p247 = scmp.ne.s32.totalorder %s230, %s246
    %p248 = scmp.eq.s32.totalorder %s23, 0
    %p249 = por %p247, %p248
    %s250 = ssub.s32 %s17, %s24
    %p251 = scmp.eq.s32.totalorder %s250, 0
    %s253 = sadd.s32 %s252, 1
    %s254 = scalar_select %p251, %s252, %s253
    %p257 = pneg %p251
    %p258 = scmp.eq.s32.totalorder %s17, 1
    %p259 = por %p257, %p258
    %p260 = scmp.ne.s32.totalorder %s252, %s255
    %p261 = scmp.eq.s32.totalorder %s17, 0
    %p262 = por %p260, %p261
    %p263 = scmp.ne.s32.totalorder %s252, %s255
    %p264 = scmp.eq.s32.totalorder %s22, 1
    %p265 = por %p263, %p264
    %p266 = scmp.ne.s32.totalorder %s255, %s256
    %p267 = scmp.eq.s32.totalorder %s22, 0
    %p268 = por %p266, %p267
    %p269 = scmp.ne.s32.totalorder %s255, %s256
    %p270 = scmp.eq.s32.totalorder %s23, 1
    %p271 = por %p269, %p270
    %p273 = scmp.ne.s32.totalorder %s256, %s272
    %p274 = scmp.eq.s32.totalorder %s23, 0
    %p275 = por %p273, %p274
    %p276 = scmp.le.s32.totalorder 1, %s17
    %p277 = scmp.lt.s32.totalorder %s17, 3
    %p278 = pnand %p276, %p277
    %p279 = pneg %p278
    // Predicated region
    $region9: #{skip_layer_forward.9} parent=5 // pred_check
      _
    $region10: #{skip_layer_forward.9} parent=5 // pred_check_branch
      %281 = sbr.rel (%p278) target = $region12
    $region11: #{skip_layer_forward.9} parent=5 // pred_region
      %s282 = ssub.s32 %s17, 1
      // Predicated region
      $region13: #{skip_layer_forward.9} parent=11 // pred_check
        %p283 = pneg %p38
      $region14: #{skip_layer_forward.9} parent=11 // pred_check_branch
        %285 = sbr.rel (%p283) target = $region16
      $region15: #{skip_layer_forward.9} parent=11 // pred_region
        _
      $region16: #{skip_layer_forward.9} parent=11 // pred_fallthru
        _
      // Predicated region
      $region17: #{skip_layer_forward.9} parent=11 // pred_check
        %p286 = pneg %p59
      $region18: #{skip_layer_forward.9} parent=11 // pred_check_branch
        %288 = sbr.rel (%p286) target = $region20
      $region19: #{skip_layer_forward.9} parent=11 // pred_region
        _
      $region20: #{skip_layer_forward.9} parent=11 // pred_fallthru
        _
      // Predicated region
      $region21: #{skip_layer_forward.9} parent=11 // pred_check
        %p289 = pneg %p80
      $region22: #{skip_layer_forward.9} parent=11 // pred_check_branch
        %291 = sbr.rel (%p289) target = $region24
      $region23: #{skip_layer_forward.9} parent=11 // pred_region
        _
      $region24: #{skip_layer_forward.9} parent=11 // pred_fallthru
        _
      // Predicated region
      $region25: #{skip_layer_forward.9} parent=11 // pred_check
        %p292 = pneg %p101
      $region26: #{skip_layer_forward.9} parent=11 // pred_check_branch
        %294 = sbr.rel (%p292) target = $region28
      $region27: #{skip_layer_forward.9} parent=11 // pred_region
        _
      $region28: #{skip_layer_forward.9} parent=11 // pred_fallthru
        _
      // Predicated region
      $region29: #{skip_layer_forward.9} parent=11 // pred_check
        %p295 = pneg %p122
      $region30: #{skip_layer_forward.9} parent=11 // pred_check_branch
        %297 = sbr.rel (%p295) target = $region32
      $region31: #{skip_layer_forward.9} parent=11 // pred_region
        _
      $region32: #{skip_layer_forward.9} parent=11 // pred_fallthru
        _
      // Predicated region
      $region33: #{skip_layer_forward.9} parent=11 // pred_check
        %p298 = pneg %p143
      $region34: #{skip_layer_forward.9} parent=11 // pred_check_branch
        %300 = sbr.rel (%p298) target = $region36
      $region35: #{skip_layer_forward.9} parent=11 // pred_region
        _
      $region36: #{skip_layer_forward.9} parent=11 // pred_fallthru
        _
      // Predicated region
      $region37: #{skip_layer_forward.9} parent=11 // pred_check
        %p301 = pneg %p164
      $region38: #{skip_layer_forward.9} parent=11 // pred_check_branch
        %303 = sbr.rel (%p301) target = $region40
      $region39: #{skip_layer_forward.9} parent=11 // pred_region
        _
      $region40: #{skip_layer_forward.9} parent=11 // pred_fallthru
        _
    $region12: #{skip_layer_forward.9} parent=5 // pred_fallthru
      _
    %p304 = scmp.lt.s32.totalorder %s17, 2
    // Predicated region
    $region41: #{skip_layer_forward.9} parent=5 // pred_check
      %p305 = pneg %p304
    $region42: #{skip_layer_forward.9} parent=5 // pred_check_branch
      %307 = sbr.rel (%p305) target = $region44
    $region43: #{skip_layer_forward.9} parent=5 // pred_region
      // Predicated region
      $region45: #{skip_layer_forward.9} parent=43 // pred_check
        %p308 = pneg %p184
      $region46: #{skip_layer_forward.9} parent=43 // pred_check_branch
        %310 = sbr.rel (%p308) target = $region48
      $region47: #{skip_layer_forward.9} parent=43 // pred_region
        %p311 = scmp.lt.s32.totalorder %s17, 1
        %s312 = scalar_select %p311, %s17, 1
        %s313 = smul.addr %s312, 9
        %s314 = smul.addr %s313, 4
        %s315 = scalar_lea.vmem %s7, %s314
      $region48: #{skip_layer_forward.9} parent=43 // pred_fallthru
        _
      // Predicated region
      $region49: #{skip_layer_forward.9} parent=43 // pred_check
        %p316 = pneg %p210
      $region50: #{skip_layer_forward.9} parent=43 // pred_check_branch
        %318 = sbr.rel (%p316) target = $region52
      $region51: #{skip_layer_forward.9} parent=43 // pred_region
        %p319 = scmp.lt.s32.totalorder %s17, 1
        %s320 = scalar_select %p319, %s17, 1
        %s321 = smul.addr %s320, 9
        %s322 = smul.addr %s321, 4
        %s323 = scalar_lea.vmem %s8, %s322
      $region52: #{skip_layer_forward.9} parent=43 // pred_fallthru
        _
    $region44: #{skip_layer_forward.9} parent=5 // pred_fallthru
      _
    %p324 = scmp.le.s32.totalorder 1, %s17
    %p325 = scmp.lt.s32.totalorder %s17, 3
    %p326 = pnand %p324, %p325
    %p327 = pneg %p326
    // Predicated region
    $region53: #{skip_layer_forward.9} parent=5 // pred_check
      _
    $region54: #{skip_layer_forward.9} parent=5 // pred_check_branch
      %329 = sbr.rel (%p326) target = $region56
    $region55: #{skip_layer_forward.9} parent=5 // pred_region
      %s330 = ssub.s32 %s17, 1
      %p331 = pneg %p38
      %p332 = pneg %p35
      %p333 = pneg %p59
      %p334 = pneg %p56
      %p335 = pneg %p80
      %p336 = pneg %p77
      %p337 = pneg %p101
      %p338 = pneg %p98
      %p339 = pneg %p122
      %p340 = pneg %p119
      %p341 = pneg %p143
      %p342 = pneg %p140
      %p343 = pneg %p164
      %p344 = pneg %p161
      %p345 = scmp.lt.s32.totalorder %s22, 1
      %s346 = scalar_select %p345, %s22, 1
      %s347 = smul.addr %s346, 9
      %s348 = smul.addr %s347, 4
      %s349 = scalar_lea.vmem %s7, %s348
      %p350 = pneg %p190
      %p351 = pneg %p187
      %p352 = scmp.lt.s32.totalorder %s22, 1
      %s353 = scalar_select %p352, %s22, 1
      %s354 = smul.addr %s353, 9
      %s355 = smul.addr %s354, 4
      %s356 = scalar_lea.vmem %s8, %s355
      %p357 = pneg %p216
      %p358 = pneg %p213
      %p359 = pneg %p242
      %p360 = pneg %p239
      %p361 = scmp.lt.s32.totalorder %s22, 1
      %s362 = scalar_select %p361, %s22, 1
      %s363 = smul.addr %s362, 8
      %s364 = scalar_lea.vmem %s9, %s363
      %p365 = pneg %p268
      %p366 = pneg %p265
      %p367 = scmp.lt.s32.totalorder %s22, 1
      %s368 = scalar_select %p367, %s22, 1
      %s369 = smul.addr %s368, 2
      %s370 = scalar_lea.vmem %s10, %s369
      %p371 = scmp.lt.s32.totalorder %s22, 1
      %s372 = scalar_select %p371, %s22, 1
      %s373 = smul.addr %s372, 9
      %s374 = smul.addr %s373, 4
      %s375 = scalar_lea.vmem %s7, %s374
      %p376 = scmp.lt.s32.totalorder %s22, 1
      %s377 = scalar_select %p376, %s22, 1
      %s378 = smul.addr %s377, 9
      %s379 = smul.addr %s378, 4
      %s380 = scalar_lea.vmem %s8, %s379
      %p381 = scmp.lt.s32.totalorder %s22, 1
      %s382 = scalar_select %p381, %s22, 1
      %s383 = smul.addr %s382, 8
      %s384 = scalar_lea.vmem %s9, %s383
      %p385 = scmp.lt.s32.totalorder %s22, 1
      %s386 = scalar_select %p385, %s22, 1
      %s387 = smul.addr %s386, 2
      %s388 = scalar_lea.vmem %s10, %s387
      %v390 = vld [vmem:[%s0] sm:$0xf]
      %v391 = vld [vmem:[%s375] sm:$0xf]
      %v392 = vld [vmem:[%s375 + $0x4] sm:$0xf]
      %v393 = vld [vmem:[%s375 + $0x8] sm:$0xf]
      %v394 = vld [vmem:[%s375 + $0xc] sm:$0xf]
      %v395 = vld [vmem:[%s375 + $0x10] sm:$0xf]
      %v396 = vld [vmem:[%s375 + $0x14] sm:$0xf]
      %v397 = vld [vmem:[%s375 + $0x18] sm:$0xf]
      %v398 = vld [vmem:[%s375 + $0x1c] sm:$0xf]
      %v399 = vld [vmem:[%s375 + $0x20] sm:$0xf]
      %v400 = vld [vmem:[%s1] sm:$0xf]
      %v401 = vld [vmem:[%s380] sm:$0xf]
      %v402 = vld [vmem:[%s380 + $0x4] sm:$0xf]
      %v403 = vld [vmem:[%s380 + $0x8] sm:$0xf]
      %v404 = vld [vmem:[%s380 + $0xc] sm:$0xf]
      %v405 = vld [vmem:[%s380 + $0x10] sm:$0xf]
      %v406 = vld [vmem:[%s380 + $0x14] sm:$0xf]
      %v407 = vld [vmem:[%s380 + $0x18] sm:$0xf]
      %v408 = vld [vmem:[%s380 + $0x1c] sm:$0xf]
      %v409 = vld [vmem:[%s380 + $0x20] sm:$0xf]
      %v419 = vunpack.c.l.b16 %v401
      %v420 = vunpack.c.l.b16 %v402
      %v421 = vunpack.c.l.b16 %v403
      %v422 = vunpack.c.l.b16 %v404
      %v423 = vunpack.c.l.b16 %v405
      %v424 = vunpack.c.l.b16 %v406
      %v425 = vunpack.c.l.b16 %v407
      %v426 = vunpack.c.l.b16 %v408
      %v427 = vunpack.c.l.b16 %v409
      %v428 = vpack.c.b16 %v420, %v419
      %v429 = vpack.c.b16 %v422, %v421
      %v430 = vpack.c.b16 %v424, %v423
      %v431 = vpack.c.b16 %v426, %v425
      %v432 = vpack.c.b16 %v427, %v427
      %vm437 = vcmask 588800
      %v439 = vsel %vm437, %v400, 0
      %vm441 = vcmask 1043456
      %v443 = vsel %vm441, %v432, 0
      %445 = vmatprep.subr.bf16.mxu0 0
      %446 = vmatpush1.bf16.msra.mxu0 %v428
      %447 = vmatprep.subr.bf16.mxu0 0
      %448 = vmatpush1.bf16.msra.mxu0 %v429
      %449 = vmatprep.subr.bf16.mxu0 0
      %450 = vmatpush1.bf16.msra.mxu0 %v430
      %451 = vmatprep.subr.bf16.mxu0 0
      %452 = vmatpush1.bf16.msra.mxu0 %v431
      %453 = vmatprep.subr.bf16.mxu0 0
      %454 = vmatpush1.bf16.msra.mxu0 %v443
      %455 = vmatprep.subr.bf16.mxu0 0
      %456 = vmatpush1.bf16.msra.mxu0 0
      %457 = vmatprep.subr.bf16.mxu0 0
      %458 = vmatpush1.bf16.msra.mxu0 0
      %459 = vmatprep.subr.bf16.mxu0 0
      %460 = vmatpush1.bf16.msra.mxu0 0
      %461 = vmatprep.subr.bf16.mxu0 0
      %462 = vmatpush1.bf16.msra.mxu0 0
      %463 = vmatprep.subr.bf16.mxu0 0
      %464 = vmatpush1.bf16.msra.mxu0 0
      %465 = vmatprep.subr.bf16.mxu0 0
      %466 = vmatpush1.bf16.msra.mxu0 0
      %467 = vmatprep.subr.bf16.mxu0 0
      %468 = vmatpush1.bf16.msra.mxu0 0
      %469 = vmatprep.subr.bf16.mxu0 0
      %470 = vmatpush1.bf16.msra.mxu0 0
      %471 = vmatprep.subr.bf16.mxu0 0
      %472 = vmatpush1.bf16.msra.mxu0 0
      %473 = vmatprep.subr.bf16.mxu0 0
      %474 = vmatpush1.bf16.msra.mxu0 0
      %475 = vmatprep.subr.bf16.mxu0 0
      %476 = vmatpush1.bf16.msra.mxu0 0
      %477 = vmatprep.mubr.bf16.mxu0 0
      %478 = vmatmul.mubr.bf16.gmra.mrb[0].mxu0 %v439
      %v479 = vpop.f32.mrb[0].mxu0
      %v480 = vadd.f32 0.0, %v479
      %v481 = vpop.f32.mrb[0].mxu0
      %v482 = vpop.f32.mrb[0].mxu0
      %v483 = vpop.f32.mrb[0].mxu0
      %484 = vdwg.mxu0
      %v494 = vunpack.c.l.b16 %v391
      %v495 = vunpack.c.l.b16 %v392
      %v496 = vunpack.c.l.b16 %v393
      %v497 = vunpack.c.l.b16 %v394
      %v498 = vunpack.c.l.b16 %v395
      %v499 = vunpack.c.l.b16 %v396
      %v500 = vunpack.c.l.b16 %v397
      %v501 = vunpack.c.l.b16 %v398
      %v502 = vunpack.c.l.b16 %v399
      %v503 = vpack.c.b16 %v495, %v494
      %v504 = vpack.c.b16 %v497, %v496
      %v505 = vpack.c.b16 %v499, %v498
      %v506 = vpack.c.b16 %v501, %v500
      %v507 = vpack.c.b16 %v502, %v502
      %v513 = vsel %vm437, %v390, 0
      %v516 = vsel %vm441, %v507, 0
      %518 = vmatprep.subr.bf16.mxu0 0
      %519 = vmatpush1.bf16.msra.mxu0 %v503
      %520 = vmatprep.subr.bf16.mxu0 0
      %521 = vmatpush1.bf16.msra.mxu0 %v504
      %522 = vmatprep.subr.bf16.mxu0 0
      %523 = vmatpush1.bf16.msra.mxu0 %v505
      %524 = vmatprep.subr.bf16.mxu0 0
      %525 = vmatpush1.bf16.msra.mxu0 %v506
      %526 = vmatprep.subr.bf16.mxu0 0
      %527 = vmatpush1.bf16.msra.mxu0 %v516
      %528 = vmatprep.subr.bf16.mxu0 0
      %529 = vmatpush1.bf16.msra.mxu0 0
      %530 = vmatprep.subr.bf16.mxu0 0
      %531 = vmatpush1.bf16.msra.mxu0 0
      %532 = vmatprep.subr.bf16.mxu0 0
      %533 = vmatpush1.bf16.msra.mxu0 0
      %534 = vmatprep.subr.bf16.mxu0 0
      %535 = vmatpush1.bf16.msra.mxu0 0
      %536 = vmatprep.subr.bf16.mxu0 0
      %537 = vmatpush1.bf16.msra.mxu0 0
      %538 = vmatprep.subr.bf16.mxu0 0
      %539 = vmatpush1.bf16.msra.mxu0 0
      %540 = vmatprep.subr.bf16.mxu0 0
      %541 = vmatpush1.bf16.msra.mxu0 0
      %542 = vmatprep.subr.bf16.mxu0 0
      %543 = vmatpush1.bf16.msra.mxu0 0
      %544 = vmatprep.subr.bf16.mxu0 0
      %545 = vmatpush1.bf16.msra.mxu0 0
      %546 = vmatprep.subr.bf16.mxu0 0
      %547 = vmatpush1.bf16.msra.mxu0 0
      %548 = vmatprep.subr.bf16.mxu0 0
      %549 = vmatpush1.bf16.msra.mxu0 0
      %550 = vmatprep.mubr.bf16.mxu0 0
      %551 = vmatmul.mubr.bf16.gmra.mrb[0].mxu0 %v513
      %v552 = vpop.f32.mrb[0].mxu0
      %v553 = vadd.f32 %v480, %v552
      %v554 = vpop.f32.mrb[0].mxu0
      %v555 = vpop.f32.mrb[0].mxu0
      %v556 = vpop.f32.mrb[0].mxu0
      %557 = vdwg.mxu0
      %v558 = vld [vmem:[%s2] sm:$0xff]
      %560 = vset.pattern.permute.xlu0 0
      %561 = vperm.xlu0 %560, %v558
      %v562 = vpop.permute.xlu0 %561
      %v564 = vadd.f32 %v553, %v562
      %vm565 = vcmask 523264
      %v566 = vsel %vm565, %v564, 0.0
      %567 = vadd.xlane.f32.xlu0 %v566
      %v568 = vpop.xlane.xlu0 %567
      %v569 = vrcp.pop 64.0
      %v570 = vmul.f32 %v568, %v569
      %v571 = vsub.f32 %v564, %v570
      %v572 = vmul.f32 %v571, %v571
      %v573 = vsel %vm565, %v572, 0.0
      %574 = vadd.xlane.f32.xlu0 %v573
      %v575 = vpop.xlane.xlu0 %574
      %v576 = vmul.f32 %v575, %v569
      %v577 = vadd.f32 %v576, 1e-05
      %v578 = vrsqrt.pop %v577
      %v579 = vmul.f32 %v571, %v578
      %v580 = vld [vmem:[%s3] sm:$0xff]
      %582 = vset.pattern.permute.xlu0 0
      %583 = vperm.xlu0 %582, %v580
      %v584 = vpop.permute.xlu0 %583
      %v586 = vmul.f32 %v579, %v584
      %v587 = vld [vmem:[%s4] sm:$0xff]
      %589 = vset.pattern.permute.xlu0 0
      %590 = vperm.xlu0 %589, %v587
      %v591 = vpop.permute.xlu0 %590
      %v593 = vadd.f32 %v586, %v591
      %vm594 = vcmp.ge.f32.partialorder %v593, 0.0
      %v595 = vmul.f32 %v593, 0.01
      %v596 = vsel %vm594, %v593, %v595
      %597 = vst.msk [vmem:[%s384] sm:$0xff] %vm565, %v596
      %v598 = vld [vmem:[%s5] sm:$0x1]
      %v599 = vpack.c.bf16 %v596, %v596
      %v600 = vld [vmem:[%s6] sm:$0x3]
      %602 = vset.pattern.permute.xlu0 0
      %603 = vperm.xlu0 %602, %v600
      %v604 = vpop.permute.xlu0 %603
      %vm606 = vcmask 64512
      %v608 = vsel %vm606, %v598, 0
      %v611 = vsel %vm441, %v599, 0
      %613 = vmatprep.subr.bf16.mxu0 0
      %614 = vmatpush1.bf16.msra.mxu0 %v611
      %615 = vmatprep.subr.bf16.mxu0 0
      %616 = vmatpush1.bf16.msra.mxu0 0
      %617 = vmatprep.subr.bf16.mxu0 0
      %618 = vmatpush1.bf16.msra.mxu0 0
      %619 = vmatprep.subr.bf16.mxu0 0
      %620 = vmatpush1.bf16.msra.mxu0 0
      %621 = vmatprep.subr.bf16.mxu0 0
      %622 = vmatpush1.bf16.msra.mxu0 0
      %623 = vmatprep.subr.bf16.mxu0 0
      %624 = vmatpush1.bf16.msra.mxu0 0
      %625 = vmatprep.subr.bf16.mxu0 0
      %626 = vmatpush1.bf16.msra.mxu0 0
      %627 = vmatprep.subr.bf16.mxu0 0
      %628 = vmatpush1.bf16.msra.mxu0 0
      %629 = vmatprep.subr.bf16.mxu0 0
      %630 = vmatpush1.bf16.msra.mxu0 0
      %631 = vmatprep.subr.bf16.mxu0 0
      %632 = vmatpush1.bf16.msra.mxu0 0
      %633 = vmatprep.subr.bf16.mxu0 0
      %634 = vmatpush1.bf16.msra.mxu0 0
      %635 = vmatprep.subr.bf16.mxu0 0
      %636 = vmatpush1.bf16.msra.mxu0 0
      %637 = vmatprep.subr.bf16.mxu0 0
      %638 = vmatpush1.bf16.msra.mxu0 0
      %639 = vmatprep.subr.bf16.mxu0 0
      %640 = vmatpush1.bf16.msra.mxu0 0
      %641 = vmatprep.subr.bf16.mxu0 0
      %642 = vmatpush1.bf16.msra.mxu0 0
      %643 = vmatprep.subr.bf16.mxu0 0
      %644 = vmatpush1.bf16.msra.mxu0 0
      %645 = vmatprep.mubr.bf16.mxu0 0
      %646 = vmatmul.mubr.bf16.gmra.mrb[0].mxu0 %v608
      %v647 = vpop.f32.mrb[0].mxu0
      %v648 = vadd.f32 %v604, %v647
      %v649 = vpop.f32.mrb[0].mxu0
      %v650 = vpop.f32.mrb[0].mxu0
      %v651 = vpop.f32.mrb[0].mxu0
      %652 = vdwg.mxu0
      %vm653 = vcmask 517120
      %654 = vst.msk [vmem:[%s388] sm:$0x3] %vm653, %v648
      %p655 = scmp.lt.s32.totalorder %s22, 1
      %s656 = scalar_select %p655, %s22, 1
      %s657 = smul.addr %s656, 8
      %s658 = scalar_lea.vmem %s9, %s657
      %p659 = scmp.lt.s32.totalorder %s22, 1
      %s660 = scalar_select %p659, %s22, 1
      %s661 = smul.addr %s660, 2
      %s662 = scalar_lea.vmem %s10, %s661
      // Predicated region
      $region57: #{skip_layer_forward.9} parent=55 // pred_check
        %p663 = pneg %p239
      $region58: #{skip_layer_forward.9} parent=55 // pred_check_branch
        %665 = sbr.rel (%p663) target = $region60
      $region59: #{skip_layer_forward.9} parent=55 // pred_region
        _
      $region60: #{skip_layer_forward.9} parent=55 // pred_fallthru
        _
      // Predicated region
      $region61: #{skip_layer_forward.9} parent=55 // pred_check
        %p666 = pneg %p265
      $region62: #{skip_layer_forward.9} parent=55 // pred_check_branch
        %668 = sbr.rel (%p666) target = $region64
      $region63: #{skip_layer_forward.9} parent=55 // pred_region
        _
      $region64: #{skip_layer_forward.9} parent=55 // pred_fallthru
        _
    $region56: #{skip_layer_forward.9} parent=5 // pred_fallthru
      _
    %p669 = scmp.le.s32.totalorder 2, %s17
    // Predicated region
    $region65: #{skip_layer_forward.9} parent=5 // pred_check
      %p670 = pneg %p669
    $region66: #{skip_layer_forward.9} parent=5 // pred_check_branch
      %672 = sbr.rel (%p670) target = $region68
    $region67: #{skip_layer_forward.9} parent=5 // pred_region
      %s673 = ssub.s32 %s17, 2
      // Predicated region
      $region69: #{skip_layer_forward.9} parent=67 // pred_check
        %p674 = pneg %p245
      $region70: #{skip_layer_forward.9} parent=67 // pred_check_branch
        %676 = sbr.rel (%p674) target = $region72
      $region71: #{skip_layer_forward.9} parent=67 // pred_region
        %p677 = scmp.lt.s32.totalorder %s23, 1
        %s678 = scalar_select %p677, %s23, 1
        %s679 = smul.addr %s678, 8
        %s680 = scalar_lea.vmem %s9, %s679
      $region72: #{skip_layer_forward.9} parent=67 // pred_fallthru
        _
      // Predicated region
      $region73: #{skip_layer_forward.9} parent=67 // pred_check
        %p681 = pneg %p271
      $region74: #{skip_layer_forward.9} parent=67 // pred_check_branch
        %683 = sbr.rel (%p681) target = $region76
      $region75: #{skip_layer_forward.9} parent=67 // pred_region
        %p684 = scmp.lt.s32.totalorder %s23, 1
        %s685 = scalar_select %p684, %s23, 1
        %s686 = smul.addr %s685, 2
        %s687 = scalar_lea.vmem %s10, %s686
      $region76: #{skip_layer_forward.9} parent=67 // pred_fallthru
        _
    $region68: #{skip_layer_forward.9} parent=5 // pred_fallthru
      _
  $region6: #{skip_layer_forward.9} parent=0 // loop_footer
    %s21 = sadd.s32 1, %s17
  $region7: #{skip_layer_forward.9} parent=0 // loop_footer_branch
    %16 = sbr.rel target = $region3
  $region8: #{skip_layer_forward.9} parent=0 // loop_exit
    _

</llo_original>
